<compile_context>
chip_gen: v7x
topology: tpu7x:2x2x1
jax: 0.10.0
libtpu: 0.0.40
codegen_flags: <defaults>
</compile_context>

<pallas_src>
import functools

import jax
import jax.numpy as jnp
import numpy as np
from jax import lax
from jax.experimental import pallas as pl
from jax.experimental.pallas import tpu as pltpu


def _cross_attn_kernel(x_ref, ctx_ref, wq_ref, wk_ref, wv_ref, wo_ref, bo_ref,
                       out_ref, *, heads, dim_head, scale, compute_dtype):
    cd = compute_dtype

    x = x_ref[0].astype(cd)       # (S, Dq)
    c = ctx_ref[0].astype(cd)     # (L, Dc)
    wq = wq_ref[...].astype(cd)   # (Dq, H*dh)
    wk = wk_ref[...].astype(cd)   # (Dc, H*dh)
    wv = wv_ref[...].astype(cd)   # (Dc, H*dh)
    wo = wo_ref[...].astype(cd)   # (H*dh, Dq)

    # Full-width lane-dense projections (one MXU matmul each, f32 accumulation).
    q = jnp.dot(x, wq, preferred_element_type=jnp.float32)   # (S, H*dh) f32
    k = jnp.dot(c, wk, preferred_element_type=jnp.float32)   # (L, H*dh) f32
    v = jnp.dot(c, wv, preferred_element_type=jnp.float32)   # (L, H*dh) f32

    # Fold 1/sqrt(dh) into q: S*(H*dh) multiplies instead of H*S*L.
    q = (q * scale).astype(cd)
    k = k.astype(cd)
    v = v.astype(cd)

    S = x.shape[0]
    Dq = wo_ref.shape[1]

    # Per-head attention, statically unrolled; head outputs are accumulated
    # through the matching W_out row-slice (no concatenate / lane packing).
    acc = jnp.zeros((S, Dq), jnp.float32)
    for h in range(heads):
        lo = h * dim_head
        hi = lo + dim_head
        q_h = q[:, lo:hi]                                              # (S, dh)
        k_h = k[:, lo:hi]                                              # (L, dh)
        v_h = v[:, lo:hi]                                              # (L, dh)

        # Contract dh of both operands directly (no materialized k.T).
        s = lax.dot_general(q_h, k_h,
                            dimension_numbers=(((1,), (1,)), ((), ())),
                            preferred_element_type=jnp.float32)        # (S, L) f32
        s = s - jnp.max(s, axis=-1, keepdims=True)
        p = jnp.exp(s)                                                 # f32
        row_sum = jnp.sum(p, axis=-1, keepdims=True)                   # (S, 1) f32

        o_h = jnp.dot(p.astype(cd), v_h,
                      preferred_element_type=jnp.float32)              # (S, dh) f32
        # Exact softmax normalization (post-PV: S*dh divides instead of S*L).
        o_h = o_h / row_sum

        acc = acc + jnp.dot(o_h.astype(cd), wo[lo:hi, :],
                            preferred_element_type=jnp.float32)        # (S, Dq)

    # Bias add in f32, single whole-tile store.
    out_ref[0] = (acc + bo_ref[...].astype(jnp.float32)).astype(out_ref.dtype)


def cross_attention(hidden_states, context, wq, wk, wv, wo, bo, *, heads,
                    dim_head, compute_dtype=jnp.bfloat16):
    """hidden_states: (B, S, Dq), context: (B, L, Dc).
    wq: (Dq, H*dh), wk/wv: (Dc, H*dh), wo: (H*dh, Dq), bo: (Dq,)."""
    B, S, Dq = hidden_states.shape
    _, L, Dc = context.shape
    inner = heads * dim_head
    scale = dim_head ** (-0.5)

    bo_2d = bo.reshape(1, Dq)

    kernel = functools.partial(_cross_attn_kernel, heads=heads,
                               dim_head=dim_head, scale=scale,
                               compute_dtype=compute_dtype)

    out = pl.pallas_call(
        kernel,
        out_shape=jax.ShapeDtypeStruct((B, S, Dq), hidden_states.dtype),
        grid_spec=pltpu.PrefetchScalarGridSpec(
            num_scalar_prefetch=0,
            grid=(B,),
            in_specs=[
                pl.BlockSpec((1, S, Dq), lambda b: (b, 0, 0)),     # hidden_states
                pl.BlockSpec((1, L, Dc), lambda b: (b, 0, 0)),     # context
                pl.BlockSpec((Dq, inner), lambda b: (0, 0)),       # Wq (lane-dense)
                pl.BlockSpec((Dc, inner), lambda b: (0, 0)),       # Wk
                pl.BlockSpec((Dc, inner), lambda b: (0, 0)),       # Wv
                pl.BlockSpec((inner, Dq), lambda b: (0, 0)),       # Wout
                pl.BlockSpec((1, Dq), lambda b: (0, 0)),           # out bias
            ],
            out_specs=pl.BlockSpec((1, S, Dq), lambda b: (b, 0, 0)),
        ),
        compiler_params=pltpu.CompilerParams(
            dimension_semantics=("parallel",)),   # one batch per TC on v7x
    )(hidden_states, context, wq, wk, wv, wo, bo_2d)
    return out


def cross_attention_reference(hidden_states, context, wq, wk, wv, wo, bo,
                              *, heads, dim_head):
    """Plain-JAX reference mirroring the PyTorch module (dropout=0, eval)."""
    B, S, Dq = hidden_states.shape
    scale = dim_head ** (-0.5)
    q = hidden_states @ wq
    k = context @ wk
    v = context @ wv

    def to_heads(t):
        b, s, d = t.shape
        return t.reshape(b, s, heads, d // heads).transpose(0, 2, 1, 3).reshape(
            b * heads, s, d // heads)

    q, k, v = to_heads(q), to_heads(k), to_heads(v)
    scores = jnp.einsum('bid,bjd->bij', q, k) * scale
    probs = jax.nn.softmax(scores, axis=-1)
    o = jnp.einsum('bij,bjd->bid', probs, v)
    o = o.reshape(B, heads, S, dim_head).transpose(0, 2, 1, 3).reshape(
        B, S, heads * dim_head)
    return o @ wo + bo


if __name__ == "__main__":
    # Small shapes consistent with the module's forward.
    batch = 2
    seq = 8          # query sequence length
    ctx_seq = 8      # context sequence length
    query_dim = 32
    cross_attention_dim = 32
    heads = 4
    dim_head = 16
    inner_dim = heads * dim_head

    key = jax.random.PRNGKey(0)
    ks = jax.random.split(key, 7)
    hidden_states = jax.random.normal(ks[0], (batch, seq, query_dim), jnp.float32)
    context = jax.random.normal(ks[1], (batch, ctx_seq, cross_attention_dim),
                                jnp.float32)

    # Deterministic parameter init (stored as (in, out) == PyTorch weight.T).
    wq = jax.random.normal(ks[2], (query_dim, inner_dim), jnp.float32) * 0.1
    wk = jax.random.normal(ks[3], (cross_attention_dim, inner_dim), jnp.float32) * 0.1
    wv = jax.random.normal(ks[4], (cross_attention_dim, inner_dim), jnp.float32) * 0.1
    wo = jax.random.normal(ks[5], (inner_dim, query_dim), jnp.float32) * 0.1
    bo = jax.random.normal(ks[6], (query_dim,), jnp.float32) * 0.1

    ref = cross_attention_reference(hidden_states, context, wq, wk, wv, wo, bo,
                                    heads=heads, dim_head=dim_head)

    # 1) Exact f32 compute path: tight check (exact softmax divide, f32 matmuls).
    out_f32 = cross_attention(hidden_states, context, wq, wk, wv, wo, bo,
                              heads=heads, dim_head=dim_head,
                              compute_dtype=jnp.float32)
    out_f32 = jax.block_until_ready(out_f32)
    np.testing.assert_allclose(np.asarray(out_f32), np.asarray(ref),
                               rtol=1e-4, atol=1e-4)

    # 2) bf16-MXU-operand path (perf-recommended on v5e/v6e/v7x): f32
    #    accumulation and f32 softmax math, so only operand rounding differs
    #    from the f32 reference -> loose tolerance reflects bf16 operand error.
    out_bf16 = cross_attention(hidden_states, context, wq, wk, wv, wo, bo,
                               heads=heads, dim_head=dim_head,
                               compute_dtype=jnp.bfloat16)
    out_bf16 = jax.block_until_ready(out_bf16)
    np.testing.assert_allclose(np.asarray(out_bf16), np.asarray(ref),
                               rtol=2e-2, atol=2e-2)

    print("KERNEL_OK")
</pallas_src>

<mosaic_0001>
module attributes {stable_mosaic.version = 11 : i64} {
  func.func @_cross_attn_kernel(%arg0: i32, %arg1: memref<1x8x32xf32, #tpu.memory_space<vmem>>, %arg2: memref<1x8x32xf32, #tpu.memory_space<vmem>>, %arg3: memref<32x64xf32, #tpu.memory_space<vmem>>, %arg4: memref<32x64xf32, #tpu.memory_space<vmem>>, %arg5: memref<32x64xf32, #tpu.memory_space<vmem>>, %arg6: memref<64x32xf32, #tpu.memory_space<vmem>>, %arg7: memref<1x32xf32, #tpu.memory_space<vmem>>, %arg8: memref<1x8x32xf32, #tpu.memory_space<vmem>>) attributes {dimension_semantics = [#tpu.dimension_semantics<parallel>], iteration_bounds = array<i64: 2>, scalar_prefetch = 0 : i64, scratch_operands = 0 : i64, tpu.core_type = #tpu.core_type<tc>, window_params = [{transform_indices = @transform_0, window_bounds = array<i64: 1, 8, 32>}, {transform_indices = @transform_1, window_bounds = array<i64: 1, 8, 32>}, {pipeline_mode = #tpu.pipeline_mode<synchronous>, transform_indices = @transform_2, window_bounds = array<i64: 32, 64>}, {pipeline_mode = #tpu.pipeline_mode<synchronous>, transform_indices = @transform_3, window_bounds = array<i64: 32, 64>}, {pipeline_mode = #tpu.pipeline_mode<synchronous>, transform_indices = @transform_4, window_bounds = array<i64: 32, 64>}, {pipeline_mode = #tpu.pipeline_mode<synchronous>, transform_indices = @transform_5, window_bounds = array<i64: 64, 32>}, {pipeline_mode = #tpu.pipeline_mode<synchronous>, transform_indices = @transform_6, window_bounds = array<i64: 1, 32>}, {transform_indices = @transform_7, window_bounds = array<i64: 1, 8, 32>}]} {
    %c0 = arith.constant 0 : index
    %c0_0 = arith.constant 0 : index
    %c0_1 = arith.constant 0 : index
    %0 = vector.load %arg1[%c0, %c0_0, %c0_1] : memref<1x8x32xf32, #tpu.memory_space<vmem>>, vector<1x8x32xf32>
    %1 = vector.shape_cast %0 : vector<1x8x32xf32> to vector<8x32xf32>
    %c0_2 = arith.constant 0 : index
    %c0_3 = arith.constant 0 : index
    %c0_4 = arith.constant 0 : index
    %2 = vector.load %arg2[%c0_2, %c0_3, %c0_4] : memref<1x8x32xf32, #tpu.memory_space<vmem>>, vector<1x8x32xf32>
    %3 = vector.shape_cast %2 : vector<1x8x32xf32> to vector<8x32xf32>
    %c0_5 = arith.constant 0 : index
    %c0_6 = arith.constant 0 : index
    %4 = vector.load %arg3[%c0_5, %c0_6] : memref<32x64xf32, #tpu.memory_space<vmem>>, vector<32x64xf32>
    %c0_7 = arith.constant 0 : index
    %c0_8 = arith.constant 0 : index
    %5 = vector.load %arg4[%c0_7, %c0_8] : memref<32x64xf32, #tpu.memory_space<vmem>>, vector<32x64xf32>
    %c0_9 = arith.constant 0 : index
    %c0_10 = arith.constant 0 : index
    %6 = vector.load %arg5[%c0_9, %c0_10] : memref<32x64xf32, #tpu.memory_space<vmem>>, vector<32x64xf32>
    %c0_11 = arith.constant 0 : index
    %c0_12 = arith.constant 0 : index
    %7 = vector.load %arg6[%c0_11, %c0_12] : memref<64x32xf32, #tpu.memory_space<vmem>>, vector<64x32xf32>
    %cst = arith.constant dense<0.000000e+00> : vector<8x64xf32>
    %8 = tpu.matmul %1, %4, %cst {dimension_numbers = #tpu.dot_dimension_numbers<[1], [0], [0], [1], [0, 0, 1, 1], [], []>} : vector<8x32xf32>, vector<32x64xf32>, vector<8x64xf32> -> vector<8x64xf32>
    %cst_13 = arith.constant dense<0.000000e+00> : vector<8x64xf32>
    %9 = tpu.matmul %3, %5, %cst_13 {dimension_numbers = #tpu.dot_dimension_numbers<[1], [0], [0], [1], [0, 0, 1, 1], [], []>} : vector<8x32xf32>, vector<32x64xf32>, vector<8x64xf32> -> vector<8x64xf32>
    %cst_14 = arith.constant dense<0.000000e+00> : vector<8x64xf32>
    %10 = tpu.matmul %3, %6, %cst_14 {dimension_numbers = #tpu.dot_dimension_numbers<[1], [0], [0], [1], [0, 0, 1, 1], [], []>} : vector<8x32xf32>, vector<32x64xf32>, vector<8x64xf32> -> vector<8x64xf32>
    %cst_15 = arith.constant 2.500000e-01 : f32
    %11 = vector.broadcast %cst_15 : f32 to vector<8x64xf32>
    %12 = arith.mulf %8, %11 : vector<8x64xf32>
    %cst_16 = arith.constant 0.000000e+00 : f32
    %13 = vector.broadcast %cst_16 : f32 to vector<8x32xf32>
    %14 = vector.extract_strided_slice %12 {offsets = [0, 0], sizes = [8, 16], strides = [1, 1]} : vector<8x64xf32> to vector<8x16xf32>
    %15 = vector.extract_strided_slice %9 {offsets = [0, 0], sizes = [8, 16], strides = [1, 1]} : vector<8x64xf32> to vector<8x16xf32>
    %16 = vector.extract_strided_slice %10 {offsets = [0, 0], sizes = [8, 16], strides = [1, 1]} : vector<8x64xf32> to vector<8x16xf32>
    %cst_17 = arith.constant dense<0.000000e+00> : vector<8x8xf32>
    %17 = tpu.matmul %14, %15, %cst_17 {dimension_numbers = #tpu.dot_dimension_numbers<[1], [1], [0], [0], [0, 0, 1, 0], [], []>} : vector<8x16xf32>, vector<8x16xf32>, vector<8x8xf32> -> vector<8x8xf32>
    %cst_18 = arith.constant dense<0xFF800000> : vector<8xf32>
    %18 = vector.multi_reduction <maximumf>, %17, %cst_18 [1] : vector<8x8xf32> to vector<8xf32>
    %19 = vector.shape_cast %18 : vector<8xf32> to vector<8x1xf32>
    %20 = vector.broadcast %19 : vector<8x1xf32> to vector<8x8xf32>
    %21 = arith.subf %17, %20 : vector<8x8xf32>
    %22 = math.exp %21 : vector<8x8xf32>
    %cst_19 = arith.constant dense<0.000000e+00> : vector<8xf32>
    %23 = vector.multi_reduction <add>, %22, %cst_19 [1] : vector<8x8xf32> to vector<8xf32>
    %24 = vector.shape_cast %23 : vector<8xf32> to vector<8x1xf32>
    %cst_20 = arith.constant dense<0.000000e+00> : vector<8x16xf32>
    %25 = tpu.matmul %22, %16, %cst_20 {dimension_numbers = #tpu.dot_dimension_numbers<[1], [0], [0], [1], [0, 0, 1, 1], [], []>} : vector<8x8xf32>, vector<8x16xf32>, vector<8x16xf32> -> vector<8x16xf32>
    %26 = vector.broadcast %24 : vector<8x1xf32> to vector<8x16xf32>
    %27 = arith.divf %25, %26 : vector<8x16xf32>
    %28 = vector.extract_strided_slice %7 {offsets = [0, 0], sizes = [16, 32], strides = [1, 1]} : vector<64x32xf32> to vector<16x32xf32>
    %cst_21 = arith.constant dense<0.000000e+00> : vector<8x32xf32>
    %29 = tpu.matmul %27, %28, %cst_21 {dimension_numbers = #tpu.dot_dimension_numbers<[1], [0], [0], [1], [0, 0, 1, 1], [], []>} : vector<8x16xf32>, vector<16x32xf32>, vector<8x32xf32> -> vector<8x32xf32>
    %30 = arith.addf %13, %29 : vector<8x32xf32>
    %31 = vector.extract_strided_slice %12 {offsets = [0, 16], sizes = [8, 16], strides = [1, 1]} : vector<8x64xf32> to vector<8x16xf32>
    %32 = vector.extract_strided_slice %9 {offsets = [0, 16], sizes = [8, 16], strides = [1, 1]} : vector<8x64xf32> to vector<8x16xf32>
    %33 = vector.extract_strided_slice %10 {offsets = [0, 16], sizes = [8, 16], strides = [1, 1]} : vector<8x64xf32> to vector<8x16xf32>
    %cst_22 = arith.constant dense<0.000000e+00> : vector<8x8xf32>
    %34 = tpu.matmul %31, %32, %cst_22 {dimension_numbers = #tpu.dot_dimension_numbers<[1], [1], [0], [0], [0, 0, 1, 0], [], []>} : vector<8x16xf32>, vector<8x16xf32>, vector<8x8xf32> -> vector<8x8xf32>
    %cst_23 = arith.constant dense<0xFF800000> : vector<8xf32>
    %35 = vector.multi_reduction <maximumf>, %34, %cst_23 [1] : vector<8x8xf32> to vector<8xf32>
    %36 = vector.shape_cast %35 : vector<8xf32> to vector<8x1xf32>
    %37 = vector.broadcast %36 : vector<8x1xf32> to vector<8x8xf32>
    %38 = arith.subf %34, %37 : vector<8x8xf32>
    %39 = math.exp %38 : vector<8x8xf32>
    %cst_24 = arith.constant dense<0.000000e+00> : vector<8xf32>
    %40 = vector.multi_reduction <add>, %39, %cst_24 [1] : vector<8x8xf32> to vector<8xf32>
    %41 = vector.shape_cast %40 : vector<8xf32> to vector<8x1xf32>
    %cst_25 = arith.constant dense<0.000000e+00> : vector<8x16xf32>
    %42 = tpu.matmul %39, %33, %cst_25 {dimension_numbers = #tpu.dot_dimension_numbers<[1], [0], [0], [1], [0, 0, 1, 1], [], []>} : vector<8x8xf32>, vector<8x16xf32>, vector<8x16xf32> -> vector<8x16xf32>
    %43 = vector.broadcast %41 : vector<8x1xf32> to vector<8x16xf32>
    %44 = arith.divf %42, %43 : vector<8x16xf32>
    %45 = vector.extract_strided_slice %7 {offsets = [16, 0], sizes = [16, 32], strides = [1, 1]} : vector<64x32xf32> to vector<16x32xf32>
    %cst_26 = arith.constant dense<0.000000e+00> : vector<8x32xf32>
    %46 = tpu.matmul %44, %45, %cst_26 {dimension_numbers = #tpu.dot_dimension_numbers<[1], [0], [0], [1], [0, 0, 1, 1], [], []>} : vector<8x16xf32>, vector<16x32xf32>, vector<8x32xf32> -> vector<8x32xf32>
    %47 = arith.addf %30, %46 : vector<8x32xf32>
    %48 = vector.extract_strided_slice %12 {offsets = [0, 32], sizes = [8, 16], strides = [1, 1]} : vector<8x64xf32> to vector<8x16xf32>
    %49 = vector.extract_strided_slice %9 {offsets = [0, 32], sizes = [8, 16], strides = [1, 1]} : vector<8x64xf32> to vector<8x16xf32>
    %50 = vector.extract_strided_slice %10 {offsets = [0, 32], sizes = [8, 16], strides = [1, 1]} : vector<8x64xf32> to vector<8x16xf32>
    %cst_27 = arith.constant dense<0.000000e+00> : vector<8x8xf32>
    %51 = tpu.matmul %48, %49, %cst_27 {dimension_numbers = #tpu.dot_dimension_numbers<[1], [1], [0], [0], [0, 0, 1, 0], [], []>} : vector<8x16xf32>, vector<8x16xf32>, vector<8x8xf32> -> vector<8x8xf32>
    %cst_28 = arith.constant dense<0xFF800000> : vector<8xf32>
    %52 = vector.multi_reduction <maximumf>, %51, %cst_28 [1] : vector<8x8xf32> to vector<8xf32>
    %53 = vector.shape_cast %52 : vector<8xf32> to vector<8x1xf32>
    %54 = vector.broadcast %53 : vector<8x1xf32> to vector<8x8xf32>
    %55 = arith.subf %51, %54 : vector<8x8xf32>
    %56 = math.exp %55 : vector<8x8xf32>
    %cst_29 = arith.constant dense<0.000000e+00> : vector<8xf32>
    %57 = vector.multi_reduction <add>, %56, %cst_29 [1] : vector<8x8xf32> to vector<8xf32>
    %58 = vector.shape_cast %57 : vector<8xf32> to vector<8x1xf32>
    %cst_30 = arith.constant dense<0.000000e+00> : vector<8x16xf32>
    %59 = tpu.matmul %56, %50, %cst_30 {dimension_numbers = #tpu.dot_dimension_numbers<[1], [0], [0], [1], [0, 0, 1, 1], [], []>} : vector<8x8xf32>, vector<8x16xf32>, vector<8x16xf32> -> vector<8x16xf32>
    %60 = vector.broadcast %58 : vector<8x1xf32> to vector<8x16xf32>
    %61 = arith.divf %59, %60 : vector<8x16xf32>
    %62 = vector.extract_strided_slice %7 {offsets = [32, 0], sizes = [16, 32], strides = [1, 1]} : vector<64x32xf32> to vector<16x32xf32>
    %cst_31 = arith.constant dense<0.000000e+00> : vector<8x32xf32>
    %63 = tpu.matmul %61, %62, %cst_31 {dimension_numbers = #tpu.dot_dimension_numbers<[1], [0], [0], [1], [0, 0, 1, 1], [], []>} : vector<8x16xf32>, vector<16x32xf32>, vector<8x32xf32> -> vector<8x32xf32>
    %64 = arith.addf %47, %63 : vector<8x32xf32>
    %65 = vector.extract_strided_slice %12 {offsets = [0, 48], sizes = [8, 16], strides = [1, 1]} : vector<8x64xf32> to vector<8x16xf32>
    %66 = vector.extract_strided_slice %9 {offsets = [0, 48], sizes = [8, 16], strides = [1, 1]} : vector<8x64xf32> to vector<8x16xf32>
    %67 = vector.extract_strided_slice %10 {offsets = [0, 48], sizes = [8, 16], strides = [1, 1]} : vector<8x64xf32> to vector<8x16xf32>
    %cst_32 = arith.constant dense<0.000000e+00> : vector<8x8xf32>
    %68 = tpu.matmul %65, %66, %cst_32 {dimension_numbers = #tpu.dot_dimension_numbers<[1], [1], [0], [0], [0, 0, 1, 0], [], []>} : vector<8x16xf32>, vector<8x16xf32>, vector<8x8xf32> -> vector<8x8xf32>
    %cst_33 = arith.constant dense<0xFF800000> : vector<8xf32>
    %69 = vector.multi_reduction <maximumf>, %68, %cst_33 [1] : vector<8x8xf32> to vector<8xf32>
    %70 = vector.shape_cast %69 : vector<8xf32> to vector<8x1xf32>
    %71 = vector.broadcast %70 : vector<8x1xf32> to vector<8x8xf32>
    %72 = arith.subf %68, %71 : vector<8x8xf32>
    %73 = math.exp %72 : vector<8x8xf32>
    %cst_34 = arith.constant dense<0.000000e+00> : vector<8xf32>
    %74 = vector.multi_reduction <add>, %73, %cst_34 [1] : vector<8x8xf32> to vector<8xf32>
    %75 = vector.shape_cast %74 : vector<8xf32> to vector<8x1xf32>
    %cst_35 = arith.constant dense<0.000000e+00> : vector<8x16xf32>
    %76 = tpu.matmul %73, %67, %cst_35 {dimension_numbers = #tpu.dot_dimension_numbers<[1], [0], [0], [1], [0, 0, 1, 1], [], []>} : vector<8x8xf32>, vector<8x16xf32>, vector<8x16xf32> -> vector<8x16xf32>
    %77 = vector.broadcast %75 : vector<8x1xf32> to vector<8x16xf32>
    %78 = arith.divf %76, %77 : vector<8x16xf32>
    %79 = vector.extract_strided_slice %7 {offsets = [48, 0], sizes = [16, 32], strides = [1, 1]} : vector<64x32xf32> to vector<16x32xf32>
    %cst_36 = arith.constant dense<0.000000e+00> : vector<8x32xf32>
    %80 = tpu.matmul %78, %79, %cst_36 {dimension_numbers = #tpu.dot_dimension_numbers<[1], [0], [0], [1], [0, 0, 1, 1], [], []>} : vector<8x16xf32>, vector<16x32xf32>, vector<8x32xf32> -> vector<8x32xf32>
    %81 = arith.addf %64, %80 : vector<8x32xf32>
    %c0_37 = arith.constant 0 : index
    %c0_38 = arith.constant 0 : index
    %82 = vector.load %arg7[%c0_37, %c0_38] : memref<1x32xf32, #tpu.memory_space<vmem>>, vector<1x32xf32>
    %83 = vector.broadcast %82 : vector<1x32xf32> to vector<8x32xf32>
    %84 = arith.addf %81, %83 : vector<8x32xf32>
    %c0_39 = arith.constant 0 : index
    %c0_40 = arith.constant 0 : index
    %c0_41 = arith.constant 0 : index
    %85 = vector.load %arg8[%c0_39, %c0_40, %c0_41] : memref<1x8x32xf32, #tpu.memory_space<vmem>>, vector<1x8x32xf32>
    %86 = vector.shape_cast %85 : vector<1x8x32xf32> to vector<8x32xf32>
    %87 = vector.shape_cast %84 : vector<8x32xf32> to vector<1x8x32xf32>
    tpu.vector_store %arg8[%c0_39, %c0_40, %c0_41], %87 {strides = array<i32>} : memref<1x8x32xf32, #tpu.memory_space<vmem>>, vector<1x8x32xf32>,
    return
  }
  func.func @transform_0(%arg0: i32) -> (i32, i32, i32) {
    %c0_i32 = arith.constant 0 : i32
    %c0_i32_0 = arith.constant 0 : i32
    %c0_i32_1 = arith.constant 0 : i32
    return %arg0, %c0_i32, %c0_i32_0 : i32, i32, i32
  }
  func.func @transform_1(%arg0: i32) -> (i32, i32, i32) {
    %c0_i32 = arith.constant 0 : i32
    %c0_i32_0 = arith.constant 0 : i32
    %c0_i32_1 = arith.constant 0 : i32
    return %arg0, %c0_i32, %c0_i32_0 : i32, i32, i32
  }
  func.func @transform_2(%arg0: i32) -> (i32, i32) {
    %c0_i32 = arith.constant 0 : i32
    %c0_i32_0 = arith.constant 0 : i32
    %c0_i32_1 = arith.constant 0 : i32
    return %c0_i32, %c0_i32_0 : i32, i32
  }
  func.func @transform_3(%arg0: i32) -> (i32, i32) {
    %c0_i32 = arith.constant 0 : i32
    %c0_i32_0 = arith.constant 0 : i32
    %c0_i32_1 = arith.constant 0 : i32
    return %c0_i32, %c0_i32_0 : i32, i32
  }
  func.func @transform_4(%arg0: i32) -> (i32, i32) {
    %c0_i32 = arith.constant 0 : i32
    %c0_i32_0 = arith.constant 0 : i32
    %c0_i32_1 = arith.constant 0 : i32
    return %c0_i32, %c0_i32_0 : i32, i32
  }
  func.func @transform_5(%arg0: i32) -> (i32, i32) {
    %c0_i32 = arith.constant 0 : i32
    %c0_i32_0 = arith.constant 0 : i32
    %c0_i32_1 = arith.constant 0 : i32
    return %c0_i32, %c0_i32_0 : i32, i32
  }
  func.func @transform_6(%arg0: i32) -> (i32, i32) {
    %c0_i32 = arith.constant 0 : i32
    %c0_i32_0 = arith.constant 0 : i32
    %c0_i32_1 = arith.constant 0 : i32
    return %c0_i32, %c0_i32_0 : i32, i32
  }
  func.func @transform_7(%arg0: i32) -> (i32, i32, i32) {
    %c0_i32 = arith.constant 0 : i32
    %c0_i32_0 = arith.constant 0 : i32
    %c0_i32_1 = arith.constant 0 : i32
    return %arg0, %c0_i32, %c0_i32_0 : i32, i32, i32
  }
}

</mosaic_0001>

<llo_original>
// kernel: tpu_custom_call.1
$region0: #{tpu_custom_call.1}
  #allocation0 [shape = 'u32[]', space=smem, size = 0x4, offset = 0x4, fixed_abs, tag = 'smem constant byte address 0x4 - core index']
  #allocation1 [shape = 'u32[144,128]{1,0:T(1,128)}', space=vmem, size = 0x12000, scoped, tag = 'internal scratch']
  %s0 = inlined_call_operand.hbm [shape: f32[2,8,32], index: 0, kind: input, shape index: {}]
  %s1 = inlined_call_operand.hbm [shape: f32[2,8,32], index: 1, kind: input, shape index: {}]
  %s2 = inlined_call_operand.vmem [shape: f32[32,64], index: 2, kind: input, shape index: {}]
  %s3 = inlined_call_operand.vmem [shape: f32[32,64], index: 3, kind: input, shape index: {}]
  %s4 = inlined_call_operand.vmem [shape: f32[32,64], index: 4, kind: input, shape index: {}]
  %s5 = inlined_call_operand.vmem [shape: f32[64,32], index: 5, kind: input, shape index: {}]
  %s6 = inlined_call_operand.vmem [shape: f32[1,32], index: 6, kind: input, shape index: {}]
  %s7 = inlined_call_operand.hbm [shape: f32[2,8,32], index: 7, kind: output, shape index: {}]
  %s8 = sld [smem:[#allocation0]]
  $region69: #{tpu_custom_call.1} parent=0
    _
  %s10 = ssub.s32 1, %s8
  %s11 = scalar_select 0, %s10, %s8
  $region1: #{tpu_custom_call.1} parent=0
    #allocation2 [shape = 'u8[8192]{0}', space=vmem, size = 0x2000, scoped, tag = 'input window, operand 0']
    #allocation3 [shape = 's32[2]{0}', space=sflag, size = 0x8, scoped, tag = 'scoped memory for tpu_custom_call.1']
    #allocation4 [shape = 's32[2]{0}', space=sflag, size = 0x8, scoped, tag = 'scoped memory for tpu_custom_call.1']
    #allocation5 [shape = 'u8[8192]{0}', space=vmem, size = 0x2000, scoped, tag = 'input window, operand 1']
    #allocation6 [shape = 's32[2]{0}', space=sflag, size = 0x8, scoped, tag = 'scoped memory for tpu_custom_call.1']
    #allocation7 [shape = 'u8[8192]{0}', space=vmem, size = 0x2000, scoped, tag = 'output window, operand 0']
    %12 = vsyncpa [#allocation3], 0
    %s13 = scalar_lea.sflag [#allocation3], 1
    %14 = vsyncpa %s13, 0
    %15 = vsyncpa [#allocation6], 0
    %s16 = scalar_lea.sflag [#allocation6], 1
    %17 = vsyncpa %s16, 0
    %18 = vsyncpa [#allocation4], 0
    %s19 = scalar_lea.sflag [#allocation4], 1
    %20 = vsyncpa %s19, 0
    loop: start=0, step=1, limit=4
    $region2: #{tpu_custom_call.1} parent=1 // loop_pre_header
      _
    $region3: #{tpu_custom_call.1} parent=1 // loop_header
      %s22 = sphi 0, %s26
      %p23 = scmp.ge.s32.totalorder %s22, 4
      %s32 = sphi 0, %s34
      %s35 = sphi 0, %s32
      %s36 = sphi 0, %s35
      %s52 = sphi 0, %s36
      %s58 = sphi 0, %s60
      %s61 = sphi 0, %s58
      %s62 = sphi 0, %s61
      %s78 = sphi 0, %s62
      %s82 = sphi 0, %s82
      %s84 = sphi 0, %s82
      %s85 = sphi 0, %s84
      %s99 = sphi 0, %s85
      %s103 = sphi 0, %s103
      %s105 = sphi 0, %s103
      %s106 = sphi 0, %s105
      %s120 = sphi 0, %s106
      %s124 = sphi 0, %s124
      %s126 = sphi 0, %s124
      %s127 = sphi 0, %s126
      %s141 = sphi 0, %s127
      %s145 = sphi 0, %s145
      %s147 = sphi 0, %s145
      %s148 = sphi 0, %s147
      %s162 = sphi 0, %s148
      %s166 = sphi 0, %s166
      %s168 = sphi 0, %s166
      %s169 = sphi 0, %s168
      %s183 = sphi 0, %s169
      %s189 = sphi 0, %s191
      %s192 = sphi 0, %s189
      %s193 = sphi 0, %s192
      %s209 = sphi 0, %s193
    $region4: #{tpu_custom_call.1} parent=1 // loop_header_branch
      %25 = sbr.rel (%p23) target = $region8
    $region5: #{tpu_custom_call.1} parent=1 // loop_body
      %s27 = ssub.s32 %s22, 1
      %s28 = ssub.s32 %s22, 2
      %s29 = sadd.s32 %s22, 1
      %s30 = ssub.s32 %s22, %s29
      %p31 = scmp.eq.s32.totalorder %s30, 0
      %s33 = sadd.s32 %s32, 1
      %s34 = scalar_select %p31, %s32, %s33
      %p37 = pneg %p31
      %p38 = scmp.eq.s32.totalorder %s22, 1
      %p39 = por %p37, %p38
      %p40 = scmp.ne.s32.totalorder %s32, %s35
      %p41 = scmp.eq.s32.totalorder %s22, 0
      %p42 = por %p40, %p41
      %p43 = scmp.ne.s32.totalorder %s32, %s35
      %p44 = scmp.eq.s32.totalorder %s27, 1
      %p45 = por %p43, %p44
      %p46 = scmp.ne.s32.totalorder %s35, %s36
      %p47 = scmp.eq.s32.totalorder %s27, 0
      %p48 = por %p46, %p47
      %p49 = scmp.ne.s32.totalorder %s35, %s36
      %p50 = scmp.eq.s32.totalorder %s28, 1
      %p51 = por %p49, %p50
      %p53 = scmp.ne.s32.totalorder %s36, %s52
      %p54 = scmp.eq.s32.totalorder %s28, 0
      %p55 = por %p53, %p54
      %s56 = ssub.s32 %s22, %s29
      %p57 = scmp.eq.s32.totalorder %s56, 0
      %s59 = sadd.s32 %s58, 1
      %s60 = scalar_select %p57, %s58, %s59
      %p63 = pneg %p57
      %p64 = scmp.eq.s32.totalorder %s22, 1
      %p65 = por %p63, %p64
      %p66 = scmp.ne.s32.totalorder %s58, %s61
      %p67 = scmp.eq.s32.totalorder %s22, 0
      %p68 = por %p66, %p67
      %p69 = scmp.ne.s32.totalorder %s58, %s61
      %p70 = scmp.eq.s32.totalorder %s27, 1
      %p71 = por %p69, %p70
      %p72 = scmp.ne.s32.totalorder %s61, %s62
      %p73 = scmp.eq.s32.totalorder %s27, 0
      %p74 = por %p72, %p73
      %p75 = scmp.ne.s32.totalorder %s61, %s62
      %p76 = scmp.eq.s32.totalorder %s28, 1
      %p77 = por %p75, %p76
      %p79 = scmp.ne.s32.totalorder %s62, %s78
      %p80 = scmp.eq.s32.totalorder %s28, 0
      %p81 = por %p79, %p80
      %s83 = sadd.s32 %s82, 1
      %p86 = scmp.eq.s32.totalorder %s22, 1
      %p87 = scmp.ne.s32.totalorder %s82, %s84
      %p88 = scmp.eq.s32.totalorder %s22, 0
      %p89 = por %p87, %p88
      %p90 = scmp.ne.s32.totalorder %s82, %s84
      %p91 = scmp.eq.s32.totalorder %s27, 1
      %p92 = por %p90, %p91
      %p93 = scmp.ne.s32.totalorder %s84, %s85
      %p94 = scmp.eq.s32.totalorder %s27, 0
      %p95 = por %p93, %p94
      %p96 = scmp.ne.s32.totalorder %s84, %s85
      %p97 = scmp.eq.s32.totalorder %s28, 1
      %p98 = por %p96, %p97
      %p100 = scmp.ne.s32.totalorder %s85, %s99
      %p101 = scmp.eq.s32.totalorder %s28, 0
      %p102 = por %p100, %p101
      %s104 = sadd.s32 %s103, 1
      %p107 = scmp.eq.s32.totalorder %s22, 1
      %p108 = scmp.ne.s32.totalorder %s103, %s105
      %p109 = scmp.eq.s32.totalorder %s22, 0
      %p110 = por %p108, %p109
      %p111 = scmp.ne.s32.totalorder %s103, %s105
      %p112 = scmp.eq.s32.totalorder %s27, 1
      %p113 = por %p111, %p112
      %p114 = scmp.ne.s32.totalorder %s105, %s106
      %p115 = scmp.eq.s32.totalorder %s27, 0
      %p116 = por %p114, %p115
      %p117 = scmp.ne.s32.totalorder %s105, %s106
      %p118 = scmp.eq.s32.totalorder %s28, 1
      %p119 = por %p117, %p118
      %p121 = scmp.ne.s32.totalorder %s106, %s120
      %p122 = scmp.eq.s32.totalorder %s28, 0
      %p123 = por %p121, %p122
      %s125 = sadd.s32 %s124, 1
      %p128 = scmp.eq.s32.totalorder %s22, 1
      %p129 = scmp.ne.s32.totalorder %s124, %s126
      %p130 = scmp.eq.s32.totalorder %s22, 0
      %p131 = por %p129, %p130
      %p132 = scmp.ne.s32.totalorder %s124, %s126
      %p133 = scmp.eq.s32.totalorder %s27, 1
      %p134 = por %p132, %p133
      %p135 = scmp.ne.s32.totalorder %s126, %s127
      %p136 = scmp.eq.s32.totalorder %s27, 0
      %p137 = por %p135, %p136
      %p138 = scmp.ne.s32.totalorder %s126, %s127
      %p139 = scmp.eq.s32.totalorder %s28, 1
      %p140 = por %p138, %p139
      %p142 = scmp.ne.s32.totalorder %s127, %s141
      %p143 = scmp.eq.s32.totalorder %s28, 0
      %p144 = por %p142, %p143
      %s146 = sadd.s32 %s145, 1
      %p149 = scmp.eq.s32.totalorder %s22, 1
      %p150 = scmp.ne.s32.totalorder %s145, %s147
      %p151 = scmp.eq.s32.totalorder %s22, 0
      %p152 = por %p150, %p151
      %p153 = scmp.ne.s32.totalorder %s145, %s147
      %p154 = scmp.eq.s32.totalorder %s27, 1
      %p155 = por %p153, %p154
      %p156 = scmp.ne.s32.totalorder %s147, %s148
      %p157 = scmp.eq.s32.totalorder %s27, 0
      %p158 = por %p156, %p157
      %p159 = scmp.ne.s32.totalorder %s147, %s148
      %p160 = scmp.eq.s32.totalorder %s28, 1
      %p161 = por %p159, %p160
      %p163 = scmp.ne.s32.totalorder %s148, %s162
      %p164 = scmp.eq.s32.totalorder %s28, 0
      %p165 = por %p163, %p164
      %s167 = sadd.s32 %s166, 1
      %p170 = scmp.eq.s32.totalorder %s22, 1
      %p171 = scmp.ne.s32.totalorder %s166, %s168
      %p172 = scmp.eq.s32.totalorder %s22, 0
      %p173 = por %p171, %p172
      %p174 = scmp.ne.s32.totalorder %s166, %s168
      %p175 = scmp.eq.s32.totalorder %s27, 1
      %p176 = por %p174, %p175
      %p177 = scmp.ne.s32.totalorder %s168, %s169
      %p178 = scmp.eq.s32.totalorder %s27, 0
      %p179 = por %p177, %p178
      %p180 = scmp.ne.s32.totalorder %s168, %s169
      %p181 = scmp.eq.s32.totalorder %s28, 1
      %p182 = por %p180, %p181
      %p184 = scmp.ne.s32.totalorder %s169, %s183
      %p185 = scmp.eq.s32.totalorder %s28, 0
      %p186 = por %p184, %p185
      %s187 = ssub.s32 %s22, %s29
      %p188 = scmp.eq.s32.totalorder %s187, 0
      %s190 = sadd.s32 %s189, 1
      %s191 = scalar_select %p188, %s189, %s190
      %p194 = pneg %p188
      %p195 = scmp.eq.s32.totalorder %s22, 1
      %p196 = por %p194, %p195
      %p197 = scmp.ne.s32.totalorder %s189, %s192
      %p198 = scmp.eq.s32.totalorder %s22, 0
      %p199 = por %p197, %p198
      %p200 = scmp.ne.s32.totalorder %s189, %s192
      %p201 = scmp.eq.s32.totalorder %s27, 1
      %p202 = por %p200, %p201
      %p203 = scmp.ne.s32.totalorder %s192, %s193
      %p204 = scmp.eq.s32.totalorder %s27, 0
      %p205 = por %p203, %p204
      %p206 = scmp.ne.s32.totalorder %s192, %s193
      %p207 = scmp.eq.s32.totalorder %s28, 1
      %p208 = por %p206, %p207
      %p210 = scmp.ne.s32.totalorder %s193, %s209
      %p211 = scmp.eq.s32.totalorder %s28, 0
      %p212 = por %p210, %p211
      %p213 = scmp.le.s32.totalorder 1, %s22
      %p214 = scmp.lt.s32.totalorder %s22, 3
      %p215 = pnand %p213, %p214
      %p216 = pneg %p215
      // Predicated region
      $region9: #{tpu_custom_call.1} parent=5 // pred_check
        _
      $region10: #{tpu_custom_call.1} parent=5 // pred_check_branch
        %218 = sbr.rel (%p215) target = $region12
      $region11: #{tpu_custom_call.1} parent=5 // pred_region
        %s219 = ssub.s32 %s22, 1
        // Predicated region
        $region13: #{tpu_custom_call.1} parent=11 // pred_check
          %p220 = pneg %p95
        $region14: #{tpu_custom_call.1} parent=11 // pred_check_branch
          %222 = sbr.rel (%p220) target = $region16
        $region15: #{tpu_custom_call.1} parent=11 // pred_region
          _
        $region16: #{tpu_custom_call.1} parent=11 // pred_fallthru
          _
        // Predicated region
        $region17: #{tpu_custom_call.1} parent=11 // pred_check
          %p223 = pneg %p116
        $region18: #{tpu_custom_call.1} parent=11 // pred_check_branch
          %225 = sbr.rel (%p223) target = $region20
        $region19: #{tpu_custom_call.1} parent=11 // pred_region
          _
        $region20: #{tpu_custom_call.1} parent=11 // pred_fallthru
          _
        // Predicated region
        $region21: #{tpu_custom_call.1} parent=11 // pred_check
          %p226 = pneg %p137
        $region22: #{tpu_custom_call.1} parent=11 // pred_check_branch
          %228 = sbr.rel (%p226) target = $region24
        $region23: #{tpu_custom_call.1} parent=11 // pred_region
          _
        $region24: #{tpu_custom_call.1} parent=11 // pred_fallthru
          _
        // Predicated region
        $region25: #{tpu_custom_call.1} parent=11 // pred_check
          %p229 = pneg %p158
        $region26: #{tpu_custom_call.1} parent=11 // pred_check_branch
          %231 = sbr.rel (%p229) target = $region28
        $region27: #{tpu_custom_call.1} parent=11 // pred_region
          _
        $region28: #{tpu_custom_call.1} parent=11 // pred_fallthru
          _
        // Predicated region
        $region29: #{tpu_custom_call.1} parent=11 // pred_check
          %p232 = pneg %p179
        $region30: #{tpu_custom_call.1} parent=11 // pred_check_branch
          %234 = sbr.rel (%p232) target = $region32
        $region31: #{tpu_custom_call.1} parent=11 // pred_region
          _
        $region32: #{tpu_custom_call.1} parent=11 // pred_fallthru
          _
      $region12: #{tpu_custom_call.1} parent=5 // pred_fallthru
        _
      %p235 = scmp.lt.s32.totalorder %s22, 2
      // Predicated region
      $region33: #{tpu_custom_call.1} parent=5 // pred_check
        %p236 = pneg %p235
      $region34: #{tpu_custom_call.1} parent=5 // pred_check_branch
        %238 = sbr.rel (%p236) target = $region36
      $region35: #{tpu_custom_call.1} parent=5 // pred_region
        // Predicated region
        $region37: #{tpu_custom_call.1} parent=35 // pred_check
          %p239 = pneg %p42
        $region38: #{tpu_custom_call.1} parent=35 // pred_check_branch
          %241 = sbr.rel (%p239) target = $region40
        $region39: #{tpu_custom_call.1} parent=35 // pred_region
          %s242 = sand.u32 %s32, 1
          %s243 = scalar_lea.sflag [#allocation3], %s242
          %s244 = sand.u32 %s32, 1
          %s245 = smul.addr %s244, 8
          %s246 = scalar_lea.vmem [#allocation2], %s245
          %s248 = ssub.s32 128, 128
          %249 = vsyncadd %s243, %s248
          %s250 = smul.addr %s22, 128
          %s251 = scalar_lea.hbm %s0, %s250
          %s253 = sshll.u32 %s246, 4
          %s254 = int_to_ptr.vmem [resolvable:$true] %s253
          %256 = dma.hbm_to_vmem [thread:$0]  %s251, 128, %s254, %s243
        $region40: #{tpu_custom_call.1} parent=35 // pred_fallthru
          _
        // Predicated region
        $region41: #{tpu_custom_call.1} parent=35 // pred_check
          %p257 = pneg %p68
        $region42: #{tpu_custom_call.1} parent=35 // pred_check_branch
          %259 = sbr.rel (%p257) target = $region44
        $region43: #{tpu_custom_call.1} parent=35 // pred_region
          %s260 = sand.u32 %s58, 1
          %s261 = scalar_lea.sflag [#allocation6], %s260
          %s262 = sand.u32 %s58, 1
          %s263 = smul.addr %s262, 8
          %s264 = scalar_lea.vmem [#allocation5], %s263
          %s266 = ssub.s32 128, 128
          %267 = vsyncadd %s261, %s266
          %s268 = smul.addr %s22, 128
          %s269 = scalar_lea.hbm %s1, %s268
          %s271 = sshll.u32 %s264, 4
          %s272 = int_to_ptr.vmem [resolvable:$true] %s271
          %274 = dma.hbm_to_vmem [thread:$0]  %s269, 128, %s272, %s261
        $region44: #{tpu_custom_call.1} parent=35 // pred_fallthru
          _
      $region36: #{tpu_custom_call.1} parent=5 // pred_fallthru
        _
      %p275 = scmp.le.s32.totalorder 1, %s22
      %p276 = scmp.lt.s32.totalorder %s22, 3
      %p277 = pnand %p275, %p276
      %p278 = pneg %p277
      // Predicated region
      $region45: #{tpu_custom_call.1} parent=5 // pred_check
        _
      $region46: #{tpu_custom_call.1} parent=5 // pred_check_branch
        %280 = sbr.rel (%p277) target = $region48
      $region47: #{tpu_custom_call.1} parent=5 // pred_region
        %s281 = ssub.s32 %s22, 1
        %s282 = sand.u32 %s35, 1
        %s283 = scalar_lea.sflag [#allocation3], %s282
        %s284 = sand.u32 %s35, 1
        %s285 = smul.addr %s284, 8
        %s286 = scalar_lea.vmem [#allocation2], %s285
        // Predicated region
        $region49: #{tpu_custom_call.1} parent=47 // pred_check
          %p287 = pneg %p48
        $region50: #{tpu_custom_call.1} parent=47 // pred_check_branch
          %289 = sbr.rel (%p287) target = $region52
        $region51: #{tpu_custom_call.1} parent=47 // pred_region
          %290 = dma.done %s283, 128
        $region52: #{tpu_custom_call.1} parent=47 // pred_fallthru
          _
        %s291 = sand.u32 %s61, 1
        %s292 = scalar_lea.sflag [#allocation6], %s291
        %s293 = sand.u32 %s61, 1
        %s294 = smul.addr %s293, 8
        %s295 = scalar_lea.vmem [#allocation5], %s294
        // Predicated region
        $region53: #{tpu_custom_call.1} parent=47 // pred_check
          %p296 = pneg %p74
        $region54: #{tpu_custom_call.1} parent=47 // pred_check_branch
          %298 = sbr.rel (%p296) target = $region56
        $region55: #{tpu_custom_call.1} parent=47 // pred_region
          %299 = dma.done %s292, 128
        $region56: #{tpu_custom_call.1} parent=47 // pred_fallthru
          _
        %s300 = sand.u32 %s35, 1
        %s301 = scalar_lea.sflag [#allocation3], %s300
        %s302 = sand.u32 %s35, 1
        %s303 = smul.addr %s302, 8
        %s304 = scalar_lea.vmem [#allocation2], %s303
        %p305 = pneg %p48
        %p306 = pneg %p45
        %s307 = sand.u32 %s61, 1
        %s308 = scalar_lea.sflag [#allocation6], %s307
        %s309 = sand.u32 %s61, 1
        %s310 = smul.addr %s309, 8
        %s311 = scalar_lea.vmem [#allocation5], %s310
        %p312 = pneg %p74
        %p313 = pneg %p71
        %p314 = pneg %p95
        %p315 = pneg %p92
        %p316 = pneg %p116
        %p317 = pneg %p113
        %p318 = pneg %p137
        %p319 = pneg %p134
        %p320 = pneg %p158
        %p321 = pneg %p155
        %p322 = pneg %p179
        %p323 = pneg %p176
        %p324 = pneg %p205
        %p325 = pneg %p202
        %s326 = sand.u32 %s192, 1
        %s327 = scalar_lea.sflag [#allocation4], %s326
        %s328 = sand.u32 %s192, 1
        %s329 = smul.addr %s328, 8
        %s330 = scalar_lea.vmem [#allocation7], %s329
        %v331 = vld [vmem:[%s286] sm:$0xff]
        %v332 = vld [vmem:[%s295] sm:$0xff]
        %v333 = vld [vmem:[%s2] sm:$0xff]
        %v334 = vld [vmem:[%s2 + $0x8] sm:$0xff]
        %v335 = vld [vmem:[%s2 + $0x10] sm:$0xff]
        %v336 = vld [vmem:[%s2 + $0x18] sm:$0xff]
        %v337 = vld [vmem:[%s3] sm:$0xff]
        %v338 = vld [vmem:[%s3 + $0x8] sm:$0xff]
        %v339 = vld [vmem:[%s3 + $0x10] sm:$0xff]
        %v340 = vld [vmem:[%s3 + $0x18] sm:$0xff]
        %v341 = vld [vmem:[%s4] sm:$0xff]
        %v342 = vld [vmem:[%s4 + $0x8] sm:$0xff]
        %v343 = vld [vmem:[%s4 + $0x10] sm:$0xff]
        %v344 = vld [vmem:[%s4 + $0x18] sm:$0xff]
        %v345 = vld [vmem:[%s5] sm:$0xff]
        %v346 = vld [vmem:[%s5 + $0x8] sm:$0xff]
        %v347 = vld [vmem:[%s5 + $0x10] sm:$0xff]
        %v348 = vld [vmem:[%s5 + $0x18] sm:$0xff]
        %v349 = vld [vmem:[%s5 + $0x20] sm:$0xff]
        %v350 = vld [vmem:[%s5 + $0x28] sm:$0xff]
        %v351 = vld [vmem:[%s5 + $0x30] sm:$0xff]
        %v352 = vld [vmem:[%s5 + $0x38] sm:$0xff]
        %vm353 = vcmask 261120
        %v355 = vsel %vm353, %v331, 0
        %357 = vmatprep.subr.mxu0 0.0
        %358 = vmatpush1.msra.mxu0 %v333
        %359 = vmatprep.subr.mxu0 0.0
        %360 = vmatpush1.msra.mxu0 %v334
        %361 = vmatprep.subr.mxu0 0.0
        %362 = vmatpush1.msra.mxu0 %v335
        %363 = vmatprep.subr.mxu0 0.0
        %364 = vmatpush1.msra.mxu0 %v336
        %365 = vmatprep.subr.mxu0 0.0
        %366 = vmatpush1.msra.mxu0 0.0
        %367 = vmatprep.subr.mxu0 0.0
        %368 = vmatpush1.msra.mxu0 0.0
        %369 = vmatprep.subr.mxu0 0.0
        %370 = vmatpush1.msra.mxu0 0.0
        %371 = vmatprep.subr.mxu0 0.0
        %372 = vmatpush1.msra.mxu0 0.0
        %373 = vmatprep.subr.mxu0 0.0
        %374 = vmatpush1.msra.mxu0 0.0
        %375 = vmatprep.subr.mxu0 0.0
        %376 = vmatpush1.msra.mxu0 0.0
        %377 = vmatprep.subr.mxu0 0.0
        %378 = vmatpush1.msra.mxu0 0.0
        %379 = vmatprep.subr.mxu0 0.0
        %380 = vmatpush1.msra.mxu0 0.0
        %381 = vmatprep.subr.mxu0 0.0
        %382 = vmatpush1.msra.mxu0 0.0
        %383 = vmatprep.subr.mxu0 0.0
        %384 = vmatpush1.msra.mxu0 0.0
        %385 = vmatprep.subr.mxu0 0.0
        %386 = vmatpush1.msra.mxu0 0.0
        %387 = vmatprep.subr.mxu0 0.0
        %388 = vmatpush1.msra.mxu0 0.0
        %389 = vmatprep.subr.mxu0 0.0
        %390 = vmatpush1.msra.mxu0 0.0
        %391 = vmatprep.subr.mxu0 0.0
        %392 = vmatpush1.msra.mxu0 0.0
        %393 = vmatprep.subr.mxu0 0.0
        %394 = vmatpush1.msra.mxu0 0.0
        %395 = vmatprep.subr.mxu0 0.0
        %396 = vmatpush1.msra.mxu0 0.0
        %397 = vmatprep.subr.mxu0 0.0
        %398 = vmatpush1.msra.mxu0 0.0
        %399 = vmatprep.subr.mxu0 0.0
        %400 = vmatpush1.msra.mxu0 0.0
        %401 = vmatprep.subr.mxu0 0.0
        %402 = vmatpush1.msra.mxu0 0.0
        %403 = vmatprep.subr.mxu0 0.0
        %404 = vmatpush1.msra.mxu0 0.0
        %405 = vmatprep.subr.mxu0 0.0
        %406 = vmatpush1.msra.mxu0 0.0
        %407 = vmatprep.subr.mxu0 0.0
        %408 = vmatpush1.msra.mxu0 0.0
        %409 = vmatprep.subr.mxu0 0.0
        %410 = vmatpush1.msra.mxu0 0.0
        %411 = vmatprep.subr.mxu0 0.0
        %412 = vmatpush1.msra.mxu0 0.0
        %413 = vmatprep.subr.mxu0 0.0
        %414 = vmatpush1.msra.mxu0 0.0
        %415 = vmatprep.subr.mxu0 0.0
        %416 = vmatpush1.msra.mxu0 0.0
        %417 = vmatprep.subr.mxu0 0.0
        %418 = vmatpush1.msra.mxu0 0.0
        %419 = vmatprep.subr.mxu0 0.0
        %420 = vmatpush1.msra.mxu0 0.0
        %421 = vmatprep.mubr.f32.mxu0 0.0
        %422 = vmatmul.mubr.f32.gmra.mrb[0].mxu0 %v355
        %v423 = vpop.f32.mrb[0].mxu0
        %v424 = vadd.f32 0.0, %v423
        %v425 = vpop.f32.mrb[0].mxu0
        %426 = vdwg.mxu0
        %v428 = vsel %vm353, %v332, 0
        %430 = vmatprep.subr.mxu0 0.0
        %431 = vmatpush1.msra.mxu0 %v337
        %432 = vmatprep.subr.mxu0 0.0
        %433 = vmatpush1.msra.mxu0 %v338
        %434 = vmatprep.subr.mxu0 0.0
        %435 = vmatpush1.msra.mxu0 %v339
        %436 = vmatprep.subr.mxu0 0.0
        %437 = vmatpush1.msra.mxu0 %v340
        %438 = vmatprep.subr.mxu0 0.0
        %439 = vmatpush1.msra.mxu0 0.0
        %440 = vmatprep.subr.mxu0 0.0
        %441 = vmatpush1.msra.mxu0 0.0
        %442 = vmatprep.subr.mxu0 0.0
        %443 = vmatpush1.msra.mxu0 0.0
        %444 = vmatprep.subr.mxu0 0.0
        %445 = vmatpush1.msra.mxu0 0.0
        %446 = vmatprep.subr.mxu0 0.0
        %447 = vmatpush1.msra.mxu0 0.0
        %448 = vmatprep.subr.mxu0 0.0
        %449 = vmatpush1.msra.mxu0 0.0
        %450 = vmatprep.subr.mxu0 0.0
        %451 = vmatpush1.msra.mxu0 0.0
        %452 = vmatprep.subr.mxu0 0.0
        %453 = vmatpush1.msra.mxu0 0.0
        %454 = vmatprep.subr.mxu0 0.0
        %455 = vmatpush1.msra.mxu0 0.0
        %456 = vmatprep.subr.mxu0 0.0
        %457 = vmatpush1.msra.mxu0 0.0
        %458 = vmatprep.subr.mxu0 0.0
        %459 = vmatpush1.msra.mxu0 0.0
        %460 = vmatprep.subr.mxu0 0.0
        %461 = vmatpush1.msra.mxu0 0.0
        %462 = vmatprep.subr.mxu0 0.0
        %463 = vmatpush1.msra.mxu0 0.0
        %464 = vmatprep.subr.mxu0 0.0
        %465 = vmatpush1.msra.mxu0 0.0
        %466 = vmatprep.subr.mxu0 0.0
        %467 = vmatpush1.msra.mxu0 0.0
        %468 = vmatprep.subr.mxu0 0.0
        %469 = vmatpush1.msra.mxu0 0.0
        %470 = vmatprep.subr.mxu0 0.0
        %471 = vmatpush1.msra.mxu0 0.0
        %472 = vmatprep.subr.mxu0 0.0
        %473 = vmatpush1.msra.mxu0 0.0
        %474 = vmatprep.subr.mxu0 0.0
        %475 = vmatpush1.msra.mxu0 0.0
        %476 = vmatprep.subr.mxu0 0.0
        %477 = vmatpush1.msra.mxu0 0.0
        %478 = vmatprep.subr.mxu0 0.0
        %479 = vmatpush1.msra.mxu0 0.0
        %480 = vmatprep.subr.mxu0 0.0
        %481 = vmatpush1.msra.mxu0 0.0
        %482 = vmatprep.subr.mxu0 0.0
        %483 = vmatpush1.msra.mxu0 0.0
        %484 = vmatprep.subr.mxu0 0.0
        %485 = vmatpush1.msra.mxu0 0.0
        %486 = vmatprep.subr.mxu0 0.0
        %487 = vmatpush1.msra.mxu0 0.0
        %488 = vmatprep.subr.mxu0 0.0
        %489 = vmatpush1.msra.mxu0 0.0
        %490 = vmatprep.subr.mxu0 0.0
        %491 = vmatpush1.msra.mxu0 0.0
        %492 = vmatprep.subr.mxu0 0.0
        %493 = vmatpush1.msra.mxu0 0.0
        %494 = vmatprep.mubr.f32.mxu0 0.0
        %495 = vmatmul.mubr.f32.gmra.mrb[0].mxu0 %v428
        %v496 = vpop.f32.mrb[0].mxu0
        %v497 = vadd.f32 0.0, %v496
        %v498 = vpop.f32.mrb[0].mxu0
        %499 = vdwg.mxu0
        %500 = vmatprep.subr.mxu0 0.0
        %501 = vmatpush1.msra.mxu0 %v341
        %502 = vmatprep.subr.mxu0 0.0
        %503 = vmatpush1.msra.mxu0 %v342
        %504 = vmatprep.subr.mxu0 0.0
        %505 = vmatpush1.msra.mxu0 %v343
        %506 = vmatprep.subr.mxu0 0.0
        %507 = vmatpush1.msra.mxu0 %v344
        %508 = vmatprep.subr.mxu0 0.0
        %509 = vmatpush1.msra.mxu0 0.0
        %510 = vmatprep.subr.mxu0 0.0
        %511 = vmatpush1.msra.mxu0 0.0
        %512 = vmatprep.subr.mxu0 0.0
        %513 = vmatpush1.msra.mxu0 0.0
        %514 = vmatprep.subr.mxu0 0.0
        %515 = vmatpush1.msra.mxu0 0.0
        %516 = vmatprep.subr.mxu0 0.0
        %517 = vmatpush1.msra.mxu0 0.0
        %518 = vmatprep.subr.mxu0 0.0
        %519 = vmatpush1.msra.mxu0 0.0
        %520 = vmatprep.subr.mxu0 0.0
        %521 = vmatpush1.msra.mxu0 0.0
        %522 = vmatprep.subr.mxu0 0.0
        %523 = vmatpush1.msra.mxu0 0.0
        %524 = vmatprep.subr.mxu0 0.0
        %525 = vmatpush1.msra.mxu0 0.0
        %526 = vmatprep.subr.mxu0 0.0
        %527 = vmatpush1.msra.mxu0 0.0
        %528 = vmatprep.subr.mxu0 0.0
        %529 = vmatpush1.msra.mxu0 0.0
        %530 = vmatprep.subr.mxu0 0.0
        %531 = vmatpush1.msra.mxu0 0.0
        %532 = vmatprep.subr.mxu0 0.0
        %533 = vmatpush1.msra.mxu0 0.0
        %534 = vmatprep.subr.mxu0 0.0
        %535 = vmatpush1.msra.mxu0 0.0
        %536 = vmatprep.subr.mxu0 0.0
        %537 = vmatpush1.msra.mxu0 0.0
        %538 = vmatprep.subr.mxu0 0.0
        %539 = vmatpush1.msra.mxu0 0.0
        %540 = vmatprep.subr.mxu0 0.0
        %541 = vmatpush1.msra.mxu0 0.0
        %542 = vmatprep.subr.mxu0 0.0
        %543 = vmatpush1.msra.mxu0 0.0
        %544 = vmatprep.subr.mxu0 0.0
        %545 = vmatpush1.msra.mxu0 0.0
        %546 = vmatprep.subr.mxu0 0.0
        %547 = vmatpush1.msra.mxu0 0.0
        %548 = vmatprep.subr.mxu0 0.0
        %549 = vmatpush1.msra.mxu0 0.0
        %550 = vmatprep.subr.mxu0 0.0
        %551 = vmatpush1.msra.mxu0 0.0
        %552 = vmatprep.subr.mxu0 0.0
        %553 = vmatpush1.msra.mxu0 0.0
        %554 = vmatprep.subr.mxu0 0.0
        %555 = vmatpush1.msra.mxu0 0.0
        %556 = vmatprep.subr.mxu0 0.0
        %557 = vmatpush1.msra.mxu0 0.0
        %558 = vmatprep.subr.mxu0 0.0
        %559 = vmatpush1.msra.mxu0 0.0
        %560 = vmatprep.subr.mxu0 0.0
        %561 = vmatpush1.msra.mxu0 0.0
        %562 = vmatprep.subr.mxu0 0.0
        %563 = vmatpush1.msra.mxu0 0.0
        %564 = vmatprep.mubr.f32.mxu0 0.0
        %565 = vmatmul.mubr.f32.gmra.mrb[0].mxu0 %v428
        %v566 = vpop.f32.mrb[0].mxu0
        %v567 = vadd.f32 0.0, %v566
        %v568 = vpop.f32.mrb[0].mxu0
        %569 = vdwg.mxu0
        %v570 = vmul.f32 %v424, 0.25
        %vm571 = vcmask 130048
        %v573 = vsel %vm571, %v570, 0
        %v576 = vsel %vm571, %v497, 0
        %578 = vmatprep.subr.mxu0 0.0
        %579 = vmatpush1.xpose.msra.mxu0 %v576
        %580 = vmatprep.subr.mxu0 0.0
        %581 = vmatpush1.xpose.msra.mxu0 0.0
        %582 = vmatprep.subr.mxu0 0.0
        %583 = vmatpush1.xpose.msra.mxu0 0.0
        %584 = vmatprep.subr.mxu0 0.0
        %585 = vmatpush1.xpose.msra.mxu0 0.0
        %586 = vmatprep.subr.mxu0 0.0
        %587 = vmatpush1.xpose.msra.mxu0 0.0
        %588 = vmatprep.subr.mxu0 0.0
        %589 = vmatpush1.xpose.msra.mxu0 0.0
        %590 = vmatprep.subr.mxu0 0.0
        %591 = vmatpush1.xpose.msra.mxu0 0.0
        %592 = vmatprep.subr.mxu0 0.0
        %593 = vmatpush1.xpose.msra.mxu0 0.0
        %594 = vmatprep.subr.mxu0 0.0
        %595 = vmatpush1.xpose.msra.mxu0 0.0
        %596 = vmatprep.subr.mxu0 0.0
        %597 = vmatpush1.xpose.msra.mxu0 0.0
        %598 = vmatprep.subr.mxu0 0.0
        %599 = vmatpush1.xpose.msra.mxu0 0.0
        %600 = vmatprep.subr.mxu0 0.0
        %601 = vmatpush1.xpose.msra.mxu0 0.0
        %602 = vmatprep.subr.mxu0 0.0
        %603 = vmatpush1.xpose.msra.mxu0 0.0
        %604 = vmatprep.subr.mxu0 0.0
        %605 = vmatpush1.xpose.msra.mxu0 0.0
        %606 = vmatprep.subr.mxu0 0.0
        %607 = vmatpush1.xpose.msra.mxu0 0.0
        %608 = vmatprep.subr.mxu0 0.0
        %609 = vmatpush1.xpose.msra.mxu0 0.0
        %610 = vmatprep.subr.mxu0 0.0
        %611 = vmatpush1.xpose.msra.mxu0 0.0
        %612 = vmatprep.subr.mxu0 0.0
        %613 = vmatpush1.xpose.msra.mxu0 0.0
        %614 = vmatprep.subr.mxu0 0.0
        %615 = vmatpush1.xpose.msra.mxu0 0.0
        %616 = vmatprep.subr.mxu0 0.0
        %617 = vmatpush1.xpose.msra.mxu0 0.0
        %618 = vmatprep.subr.mxu0 0.0
        %619 = vmatpush1.xpose.msra.mxu0 0.0
        %620 = vmatprep.subr.mxu0 0.0
        %621 = vmatpush1.xpose.msra.mxu0 0.0
        %622 = vmatprep.subr.mxu0 0.0
        %623 = vmatpush1.xpose.msra.mxu0 0.0
        %624 = vmatprep.subr.mxu0 0.0
        %625 = vmatpush1.xpose.msra.mxu0 0.0
        %626 = vmatprep.subr.mxu0 0.0
        %627 = vmatpush1.xpose.msra.mxu0 0.0
        %628 = vmatprep.subr.mxu0 0.0
        %629 = vmatpush1.xpose.msra.mxu0 0.0
        %630 = vmatprep.subr.mxu0 0.0
        %631 = vmatpush1.xpose.msra.mxu0 0.0
        %632 = vmatprep.subr.mxu0 0.0
        %633 = vmatpush1.xpose.msra.mxu0 0.0
        %634 = vmatprep.subr.mxu0 0.0
        %635 = vmatpush1.xpose.msra.mxu0 0.0
        %636 = vmatprep.subr.mxu0 0.0
        %637 = vmatpush1.xpose.msra.mxu0 0.0
        %638 = vmatprep.subr.mxu0 0.0
        %639 = vmatpush1.xpose.msra.mxu0 0.0
        %640 = vmatprep.subr.mxu0 0.0
        %641 = vmatpush1.xpose.msra.mxu0 0.0
        %642 = vmatprep.mubr.f32.mxu0 0.0
        %643 = vmatmul.mubr.f32.gmra.mrb[0].mxu0 %v573
        %v644 = vpop.f32.mrb[0].mxu0
        %v645 = vadd.f32 0.0, %v644
        %v646 = vpop.f32.mrb[0].mxu0
        %647 = vdwg.mxu0
        %vm648 = vcmask 64512
        %v649 = vsel %vm648, %v645, -inf
        %650 = vmax.xlane.f32.xlu0 %v649
        %v651 = vpop.xlane.xlu0 %650
        %v652 = vsub.f32 %v645, %v651
        %v653 = vmul.f32 %v652, 1.442695
        %v654 = vpow.pop %v653
        %v655 = vsel %vm648, %v654, 0.0
        %656 = vadd.xlane.f32.xlu0 %v655
        %v657 = vpop.xlane.xlu0 %656
        %v659 = vsel %vm648, %v654, 0
        %661 = vmatprep.subr.mxu0 0.0
        %662 = vmatpush1.msra.mxu0 %v567
        %663 = vmatprep.subr.mxu0 0.0
        %664 = vmatpush1.msra.mxu0 0.0
        %665 = vmatprep.subr.mxu0 0.0
        %666 = vmatpush1.msra.mxu0 0.0
        %667 = vmatprep.subr.mxu0 0.0
        %668 = vmatpush1.msra.mxu0 0.0
        %669 = vmatprep.subr.mxu0 0.0
        %670 = vmatpush1.msra.mxu0 0.0
        %671 = vmatprep.subr.mxu0 0.0
        %672 = vmatpush1.msra.mxu0 0.0
        %673 = vmatprep.subr.mxu0 0.0
        %674 = vmatpush1.msra.mxu0 0.0
        %675 = vmatprep.subr.mxu0 0.0
        %676 = vmatpush1.msra.mxu0 0.0
        %677 = vmatprep.subr.mxu0 0.0
        %678 = vmatpush1.msra.mxu0 0.0
        %679 = vmatprep.subr.mxu0 0.0
        %680 = vmatpush1.msra.mxu0 0.0
        %681 = vmatprep.subr.mxu0 0.0
        %682 = vmatpush1.msra.mxu0 0.0
        %683 = vmatprep.subr.mxu0 0.0
        %684 = vmatpush1.msra.mxu0 0.0
        %685 = vmatprep.subr.mxu0 0.0
        %686 = vmatpush1.msra.mxu0 0.0
        %687 = vmatprep.subr.mxu0 0.0
        %688 = vmatpush1.msra.mxu0 0.0
        %689 = vmatprep.subr.mxu0 0.0
        %690 = vmatpush1.msra.mxu0 0.0
        %691 = vmatprep.subr.mxu0 0.0
        %692 = vmatpush1.msra.mxu0 0.0
        %693 = vmatprep.subr.mxu0 0.0
        %694 = vmatpush1.msra.mxu0 0.0
        %695 = vmatprep.subr.mxu0 0.0
        %696 = vmatpush1.msra.mxu0 0.0
        %697 = vmatprep.subr.mxu0 0.0
        %698 = vmatpush1.msra.mxu0 0.0
        %699 = vmatprep.subr.mxu0 0.0
        %700 = vmatpush1.msra.mxu0 0.0
        %701 = vmatprep.subr.mxu0 0.0
        %702 = vmatpush1.msra.mxu0 0.0
        %703 = vmatprep.subr.mxu0 0.0
        %704 = vmatpush1.msra.mxu0 0.0
        %705 = vmatprep.subr.mxu0 0.0
        %706 = vmatpush1.msra.mxu0 0.0
        %707 = vmatprep.subr.mxu0 0.0
        %708 = vmatpush1.msra.mxu0 0.0
        %709 = vmatprep.subr.mxu0 0.0
        %710 = vmatpush1.msra.mxu0 0.0
        %711 = vmatprep.subr.mxu0 0.0
        %712 = vmatpush1.msra.mxu0 0.0
        %713 = vmatprep.subr.mxu0 0.0
        %714 = vmatpush1.msra.mxu0 0.0
        %715 = vmatprep.subr.mxu0 0.0
        %716 = vmatpush1.msra.mxu0 0.0
        %717 = vmatprep.subr.mxu0 0.0
        %718 = vmatpush1.msra.mxu0 0.0
        %719 = vmatprep.subr.mxu0 0.0
        %720 = vmatpush1.msra.mxu0 0.0
        %721 = vmatprep.subr.mxu0 0.0
        %722 = vmatpush1.msra.mxu0 0.0
        %723 = vmatprep.subr.mxu0 0.0
        %724 = vmatpush1.msra.mxu0 0.0
        %725 = vmatprep.mubr.f32.mxu0 0.0
        %726 = vmatmul.mubr.f32.gmra.mrb[0].mxu0 %v659
        %v727 = vpop.f32.mrb[0].mxu0
        %v728 = vadd.f32 0.0, %v727
        %v729 = vpop.f32.mrb[0].mxu0
        %730 = vdwg.mxu0
        %v731 = vrcp.pop %v657
        %v732 = vmul.f32 %v728, %v731
        %733 = vrot.lane.b32.xlu0 %v570, 112
        %v734 = vpop.permute.xlu0 %733
        %735 = vrot.lane.b32.xlu0 %v497, 112
        %v736 = vpop.permute.xlu0 %735
        %v737 = vsel %vm571, %v734, 0
        %v739 = vsel %vm571, %v736, 0
        %741 = vmatprep.subr.mxu0 0.0
        %742 = vmatpush1.xpose.msra.mxu0 %v739
        %743 = vmatprep.subr.mxu0 0.0
        %744 = vmatpush1.xpose.msra.mxu0 0.0
        %745 = vmatprep.subr.mxu0 0.0
        %746 = vmatpush1.xpose.msra.mxu0 0.0
        %747 = vmatprep.subr.mxu0 0.0
        %748 = vmatpush1.xpose.msra.mxu0 0.0
        %749 = vmatprep.subr.mxu0 0.0
        %750 = vmatpush1.xpose.msra.mxu0 0.0
        %751 = vmatprep.subr.mxu0 0.0
        %752 = vmatpush1.xpose.msra.mxu0 0.0
        %753 = vmatprep.subr.mxu0 0.0
        %754 = vmatpush1.xpose.msra.mxu0 0.0
        %755 = vmatprep.subr.mxu0 0.0
        %756 = vmatpush1.xpose.msra.mxu0 0.0
        %757 = vmatprep.subr.mxu0 0.0
        %758 = vmatpush1.xpose.msra.mxu0 0.0
        %759 = vmatprep.subr.mxu0 0.0
        %760 = vmatpush1.xpose.msra.mxu0 0.0
        %761 = vmatprep.subr.mxu0 0.0
        %762 = vmatpush1.xpose.msra.mxu0 0.0
        %763 = vmatprep.subr.mxu0 0.0
        %764 = vmatpush1.xpose.msra.mxu0 0.0
        %765 = vmatprep.subr.mxu0 0.0
        %766 = vmatpush1.xpose.msra.mxu0 0.0
        %767 = vmatprep.subr.mxu0 0.0
        %768 = vmatpush1.xpose.msra.mxu0 0.0
        %769 = vmatprep.subr.mxu0 0.0
        %770 = vmatpush1.xpose.msra.mxu0 0.0
        %771 = vmatprep.subr.mxu0 0.0
        %772 = vmatpush1.xpose.msra.mxu0 0.0
        %773 = vmatprep.subr.mxu0 0.0
        %774 = vmatpush1.xpose.msra.mxu0 0.0
        %775 = vmatprep.subr.mxu0 0.0
        %776 = vmatpush1.xpose.msra.mxu0 0.0
        %777 = vmatprep.subr.mxu0 0.0
        %778 = vmatpush1.xpose.msra.mxu0 0.0
        %779 = vmatprep.subr.mxu0 0.0
        %780 = vmatpush1.xpose.msra.mxu0 0.0
        %781 = vmatprep.subr.mxu0 0.0
        %782 = vmatpush1.xpose.msra.mxu0 0.0
        %783 = vmatprep.subr.mxu0 0.0
        %784 = vmatpush1.xpose.msra.mxu0 0.0
        %785 = vmatprep.subr.mxu0 0.0
        %786 = vmatpush1.xpose.msra.mxu0 0.0
        %787 = vmatprep.subr.mxu0 0.0
        %788 = vmatpush1.xpose.msra.mxu0 0.0
        %789 = vmatprep.subr.mxu0 0.0
        %790 = vmatpush1.xpose.msra.mxu0 0.0
        %791 = vmatprep.subr.mxu0 0.0
        %792 = vmatpush1.xpose.msra.mxu0 0.0
        %793 = vmatprep.subr.mxu0 0.0
        %794 = vmatpush1.xpose.msra.mxu0 0.0
        %795 = vmatprep.subr.mxu0 0.0
        %796 = vmatpush1.xpose.msra.mxu0 0.0
        %797 = vmatprep.subr.mxu0 0.0
        %798 = vmatpush1.xpose.msra.mxu0 0.0
        %799 = vmatprep.subr.mxu0 0.0
        %800 = vmatpush1.xpose.msra.mxu0 0.0
        %801 = vmatprep.subr.mxu0 0.0
        %802 = vmatpush1.xpose.msra.mxu0 0.0
        %803 = vmatprep.subr.mxu0 0.0
        %804 = vmatpush1.xpose.msra.mxu0 0.0
        %805 = vmatprep.mubr.f32.mxu0 0.0
        %806 = vmatmul.mubr.f32.gmra.mrb[0].mxu0 %v737
        %v807 = vpop.f32.mrb[0].mxu0
        %v808 = vadd.f32 0.0, %v807
        %v809 = vpop.f32.mrb[0].mxu0
        %810 = vdwg.mxu0
        %v811 = vsel %vm648, %v808, -inf
        %812 = vmax.xlane.f32.xlu0 %v811
        %v813 = vpop.xlane.xlu0 %812
        %v814 = vsub.f32 %v808, %v813
        %v815 = vmul.f32 %v814, 1.442695
        %v816 = vpow.pop %v815
        %v817 = vsel %vm648, %v816, 0.0
        %818 = vadd.xlane.f32.xlu0 %v817
        %v819 = vpop.xlane.xlu0 %818
        %821 = vrot.lane.b32.xlu0 %v567, 112
        %v822 = vpop.permute.xlu0 %821
        %v825 = vsel %vm648, %v816, 0
        %827 = vmatprep.subr.mxu0 0.0
        %828 = vmatpush1.msra.mxu0 %v822
        %829 = vmatprep.subr.mxu0 0.0
        %830 = vmatpush1.msra.mxu0 0.0
        %831 = vmatprep.subr.mxu0 0.0
        %832 = vmatpush1.msra.mxu0 0.0
        %833 = vmatprep.subr.mxu0 0.0
        %834 = vmatpush1.msra.mxu0 0.0
        %835 = vmatprep.subr.mxu0 0.0
        %836 = vmatpush1.msra.mxu0 0.0
        %837 = vmatprep.subr.mxu0 0.0
        %838 = vmatpush1.msra.mxu0 0.0
        %839 = vmatprep.subr.mxu0 0.0
        %840 = vmatpush1.msra.mxu0 0.0
        %841 = vmatprep.subr.mxu0 0.0
        %842 = vmatpush1.msra.mxu0 0.0
        %843 = vmatprep.subr.mxu0 0.0
        %844 = vmatpush1.msra.mxu0 0.0
        %845 = vmatprep.subr.mxu0 0.0
        %846 = vmatpush1.msra.mxu0 0.0
        %847 = vmatprep.subr.mxu0 0.0
        %848 = vmatpush1.msra.mxu0 0.0
        %849 = vmatprep.subr.mxu0 0.0
        %850 = vmatpush1.msra.mxu0 0.0
        %851 = vmatprep.subr.mxu0 0.0
        %852 = vmatpush1.msra.mxu0 0.0
        %853 = vmatprep.subr.mxu0 0.0
        %854 = vmatpush1.msra.mxu0 0.0
        %855 = vmatprep.subr.mxu0 0.0
        %856 = vmatpush1.msra.mxu0 0.0
        %857 = vmatprep.subr.mxu0 0.0
        %858 = vmatpush1.msra.mxu0 0.0
        %859 = vmatprep.subr.mxu0 0.0
        %860 = vmatpush1.msra.mxu0 0.0
        %861 = vmatprep.subr.mxu0 0.0
        %862 = vmatpush1.msra.mxu0 0.0
        %863 = vmatprep.subr.mxu0 0.0
        %864 = vmatpush1.msra.mxu0 0.0
        %865 = vmatprep.subr.mxu0 0.0
        %866 = vmatpush1.msra.mxu0 0.0
        %867 = vmatprep.subr.mxu0 0.0
        %868 = vmatpush1.msra.mxu0 0.0
        %869 = vmatprep.subr.mxu0 0.0
        %870 = vmatpush1.msra.mxu0 0.0
        %871 = vmatprep.subr.mxu0 0.0
        %872 = vmatpush1.msra.mxu0 0.0
        %873 = vmatprep.subr.mxu0 0.0
        %874 = vmatpush1.msra.mxu0 0.0
        %875 = vmatprep.subr.mxu0 0.0
        %876 = vmatpush1.msra.mxu0 0.0
        %877 = vmatprep.subr.mxu0 0.0
        %878 = vmatpush1.msra.mxu0 0.0
        %879 = vmatprep.subr.mxu0 0.0
        %880 = vmatpush1.msra.mxu0 0.0
        %881 = vmatprep.subr.mxu0 0.0
        %882 = vmatpush1.msra.mxu0 0.0
        %883 = vmatprep.subr.mxu0 0.0
        %884 = vmatpush1.msra.mxu0 0.0
        %885 = vmatprep.subr.mxu0 0.0
        %886 = vmatpush1.msra.mxu0 0.0
        %887 = vmatprep.subr.mxu0 0.0
        %888 = vmatpush1.msra.mxu0 0.0
        %889 = vmatprep.subr.mxu0 0.0
        %890 = vmatpush1.msra.mxu0 0.0
        %891 = vmatprep.mubr.f32.mxu0 0.0
        %892 = vmatmul.mubr.f32.gmra.mrb[0].mxu0 %v825
        %v893 = vpop.f32.mrb[0].mxu0
        %v894 = vadd.f32 0.0, %v893
        %v895 = vpop.f32.mrb[0].mxu0
        %896 = vdwg.mxu0
        %v897 = vrcp.pop %v819
        %v898 = vmul.f32 %v894, %v897
        %v900 = vsel %vm571, %v898, 0
        %902 = vmatprep.subr.mxu0 0.0
        %903 = vmatpush1.msra.mxu0 %v347
        %904 = vmatprep.subr.mxu0 0.0
        %905 = vmatpush1.msra.mxu0 %v348
        %906 = vmatprep.subr.mxu0 0.0
        %907 = vmatpush1.msra.mxu0 0.0
        %908 = vmatprep.subr.mxu0 0.0
        %909 = vmatpush1.msra.mxu0 0.0
        %910 = vmatprep.subr.mxu0 0.0
        %911 = vmatpush1.msra.mxu0 0.0
        %912 = vmatprep.subr.mxu0 0.0
        %913 = vmatpush1.msra.mxu0 0.0
        %914 = vmatprep.subr.mxu0 0.0
        %915 = vmatpush1.msra.mxu0 0.0
        %916 = vmatprep.subr.mxu0 0.0
        %917 = vmatpush1.msra.mxu0 0.0
        %918 = vmatprep.subr.mxu0 0.0
        %919 = vmatpush1.msra.mxu0 0.0
        %920 = vmatprep.subr.mxu0 0.0
        %921 = vmatpush1.msra.mxu0 0.0
        %922 = vmatprep.subr.mxu0 0.0
        %923 = vmatpush1.msra.mxu0 0.0
        %924 = vmatprep.subr.mxu0 0.0
        %925 = vmatpush1.msra.mxu0 0.0
        %926 = vmatprep.subr.mxu0 0.0
        %927 = vmatpush1.msra.mxu0 0.0
        %928 = vmatprep.subr.mxu0 0.0
        %929 = vmatpush1.msra.mxu0 0.0
        %930 = vmatprep.subr.mxu0 0.0
        %931 = vmatpush1.msra.mxu0 0.0
        %932 = vmatprep.subr.mxu0 0.0
        %933 = vmatpush1.msra.mxu0 0.0
        %934 = vmatprep.subr.mxu0 0.0
        %935 = vmatpush1.msra.mxu0 0.0
        %936 = vmatprep.subr.mxu0 0.0
        %937 = vmatpush1.msra.mxu0 0.0
        %938 = vmatprep.subr.mxu0 0.0
        %939 = vmatpush1.msra.mxu0 0.0
        %940 = vmatprep.subr.mxu0 0.0
        %941 = vmatpush1.msra.mxu0 0.0
        %942 = vmatprep.subr.mxu0 0.0
        %943 = vmatpush1.msra.mxu0 0.0
        %944 = vmatprep.subr.mxu0 0.0
        %945 = vmatpush1.msra.mxu0 0.0
        %946 = vmatprep.subr.mxu0 0.0
        %947 = vmatpush1.msra.mxu0 0.0
        %948 = vmatprep.subr.mxu0 0.0
        %949 = vmatpush1.msra.mxu0 0.0
        %950 = vmatprep.subr.mxu0 0.0
        %951 = vmatpush1.msra.mxu0 0.0
        %952 = vmatprep.subr.mxu0 0.0
        %953 = vmatpush1.msra.mxu0 0.0
        %954 = vmatprep.subr.mxu0 0.0
        %955 = vmatpush1.msra.mxu0 0.0
        %956 = vmatprep.subr.mxu0 0.0
        %957 = vmatpush1.msra.mxu0 0.0
        %958 = vmatprep.subr.mxu0 0.0
        %959 = vmatpush1.msra.mxu0 0.0
        %960 = vmatprep.subr.mxu0 0.0
        %961 = vmatpush1.msra.mxu0 0.0
        %962 = vmatprep.subr.mxu0 0.0
        %963 = vmatpush1.msra.mxu0 0.0
        %964 = vmatprep.subr.mxu0 0.0
        %965 = vmatpush1.msra.mxu0 0.0
        %966 = vmatprep.mubr.f32.mxu0 0.0
        %967 = vmatmul.mubr.f32.gmra.mrb[0].mxu0 %v900
        %v968 = vpop.f32.mrb[0].mxu0
        %v969 = vadd.f32 0.0, %v968
        %v970 = vpop.f32.mrb[0].mxu0
        %971 = vdwg.mxu0
        %v973 = vsel %vm571, %v732, 0
        %975 = vmatprep.subr.mxu0 0.0
        %976 = vmatpush1.msra.mxu0 %v345
        %977 = vmatprep.subr.mxu0 0.0
        %978 = vmatpush1.msra.mxu0 %v346
        %979 = vmatprep.subr.mxu0 0.0
        %980 = vmatpush1.msra.mxu0 0.0
        %981 = vmatprep.subr.mxu0 0.0
        %982 = vmatpush1.msra.mxu0 0.0
        %983 = vmatprep.subr.mxu0 0.0
        %984 = vmatpush1.msra.mxu0 0.0
        %985 = vmatprep.subr.mxu0 0.0
        %986 = vmatpush1.msra.mxu0 0.0
        %987 = vmatprep.subr.mxu0 0.0
        %988 = vmatpush1.msra.mxu0 0.0
        %989 = vmatprep.subr.mxu0 0.0
        %990 = vmatpush1.msra.mxu0 0.0
        %991 = vmatprep.subr.mxu0 0.0
        %992 = vmatpush1.msra.mxu0 0.0
        %993 = vmatprep.subr.mxu0 0.0
        %994 = vmatpush1.msra.mxu0 0.0
        %995 = vmatprep.subr.mxu0 0.0
        %996 = vmatpush1.msra.mxu0 0.0
        %997 = vmatprep.subr.mxu0 0.0
        %998 = vmatpush1.msra.mxu0 0.0
        %999 = vmatprep.subr.mxu0 0.0
        %1000 = vmatpush1.msra.mxu0 0.0
        %1001 = vmatprep.subr.mxu0 0.0
        %1002 = vmatpush1.msra.mxu0 0.0
        %1003 = vmatprep.subr.mxu0 0.0
        %1004 = vmatpush1.msra.mxu0 0.0
        %1005 = vmatprep.subr.mxu0 0.0
        %1006 = vmatpush1.msra.mxu0 0.0
        %1007 = vmatprep.subr.mxu0 0.0
        %1008 = vmatpush1.msra.mxu0 0.0
        %1009 = vmatprep.subr.mxu0 0.0
        %1010 = vmatpush1.msra.mxu0 0.0
        %1011 = vmatprep.subr.mxu0 0.0
        %1012 = vmatpush1.msra.mxu0 0.0
        %1013 = vmatprep.subr.mxu0 0.0
        %1014 = vmatpush1.msra.mxu0 0.0
        %1015 = vmatprep.subr.mxu0 0.0
        %1016 = vmatpush1.msra.mxu0 0.0
        %1017 = vmatprep.subr.mxu0 0.0
        %1018 = vmatpush1.msra.mxu0 0.0
        %1019 = vmatprep.subr.mxu0 0.0
        %1020 = vmatpush1.msra.mxu0 0.0
        %1021 = vmatprep.subr.mxu0 0.0
        %1022 = vmatpush1.msra.mxu0 0.0
        %1023 = vmatprep.subr.mxu0 0.0
        %1024 = vmatpush1.msra.mxu0 0.0
        %1025 = vmatprep.subr.mxu0 0.0
        %1026 = vmatpush1.msra.mxu0 0.0
        %1027 = vmatprep.subr.mxu0 0.0
        %1028 = vmatpush1.msra.mxu0 0.0
        %1029 = vmatprep.subr.mxu0 0.0
        %1030 = vmatpush1.msra.mxu0 0.0
        %1031 = vmatprep.subr.mxu0 0.0
        %1032 = vmatpush1.msra.mxu0 0.0
        %1033 = vmatprep.subr.mxu0 0.0
        %1034 = vmatpush1.msra.mxu0 0.0
        %1035 = vmatprep.subr.mxu0 0.0
        %1036 = vmatpush1.msra.mxu0 0.0
        %1037 = vmatprep.subr.mxu0 0.0
        %1038 = vmatpush1.msra.mxu0 0.0
        %1039 = vmatprep.mubr.f32.mxu0 0.0
        %1040 = vmatmul.mubr.f32.gmra.mrb[0].mxu0 %v973
        %v1041 = vpop.f32.mrb[0].mxu0
        %v1042 = vadd.f32 %v969, %v1041
        %v1043 = vpop.f32.mrb[0].mxu0
        %1044 = vdwg.mxu0
        %1045 = vrot.lane.b32.xlu0 %v570, 96
        %v1046 = vpop.permute.xlu0 %1045
        %1047 = vrot.lane.b32.xlu0 %v497, 96
        %v1048 = vpop.permute.xlu0 %1047
        %v1049 = vsel %vm571, %v1046, 0
        %v1051 = vsel %vm571, %v1048, 0
        %1053 = vmatprep.subr.mxu0 0.0
        %1054 = vmatpush1.xpose.msra.mxu0 %v1051
        %1055 = vmatprep.subr.mxu0 0.0
        %1056 = vmatpush1.xpose.msra.mxu0 0.0
        %1057 = vmatprep.subr.mxu0 0.0
        %1058 = vmatpush1.xpose.msra.mxu0 0.0
        %1059 = vmatprep.subr.mxu0 0.0
        %1060 = vmatpush1.xpose.msra.mxu0 0.0
        %1061 = vmatprep.subr.mxu0 0.0
        %1062 = vmatpush1.xpose.msra.mxu0 0.0
        %1063 = vmatprep.subr.mxu0 0.0
        %1064 = vmatpush1.xpose.msra.mxu0 0.0
        %1065 = vmatprep.subr.mxu0 0.0
        %1066 = vmatpush1.xpose.msra.mxu0 0.0
        %1067 = vmatprep.subr.mxu0 0.0
        %1068 = vmatpush1.xpose.msra.mxu0 0.0
        %1069 = vmatprep.subr.mxu0 0.0
        %1070 = vmatpush1.xpose.msra.mxu0 0.0
        %1071 = vmatprep.subr.mxu0 0.0
        %1072 = vmatpush1.xpose.msra.mxu0 0.0
        %1073 = vmatprep.subr.mxu0 0.0
        %1074 = vmatpush1.xpose.msra.mxu0 0.0
        %1075 = vmatprep.subr.mxu0 0.0
        %1076 = vmatpush1.xpose.msra.mxu0 0.0
        %1077 = vmatprep.subr.mxu0 0.0
        %1078 = vmatpush1.xpose.msra.mxu0 0.0
        %1079 = vmatprep.subr.mxu0 0.0
        %1080 = vmatpush1.xpose.msra.mxu0 0.0
        %1081 = vmatprep.subr.mxu0 0.0
        %1082 = vmatpush1.xpose.msra.mxu0 0.0
        %1083 = vmatprep.subr.mxu0 0.0
        %1084 = vmatpush1.xpose.msra.mxu0 0.0
        %1085 = vmatprep.subr.mxu0 0.0
        %1086 = vmatpush1.xpose.msra.mxu0 0.0
        %1087 = vmatprep.subr.mxu0 0.0
        %1088 = vmatpush1.xpose.msra.mxu0 0.0
        %1089 = vmatprep.subr.mxu0 0.0
        %1090 = vmatpush1.xpose.msra.mxu0 0.0
        %1091 = vmatprep.subr.mxu0 0.0
        %1092 = vmatpush1.xpose.msra.mxu0 0.0
        %1093 = vmatprep.subr.mxu0 0.0
        %1094 = vmatpush1.xpose.msra.mxu0 0.0
        %1095 = vmatprep.subr.mxu0 0.0
        %1096 = vmatpush1.xpose.msra.mxu0 0.0
        %1097 = vmatprep.subr.mxu0 0.0
        %1098 = vmatpush1.xpose.msra.mxu0 0.0
        %1099 = vmatprep.subr.mxu0 0.0
        %1100 = vmatpush1.xpose.msra.mxu0 0.0
        %1101 = vmatprep.subr.mxu0 0.0
        %1102 = vmatpush1.xpose.msra.mxu0 0.0
        %1103 = vmatprep.subr.mxu0 0.0
        %1104 = vmatpush1.xpose.msra.mxu0 0.0
        %1105 = vmatprep.subr.mxu0 0.0
        %1106 = vmatpush1.xpose.msra.mxu0 0.0
        %1107 = vmatprep.subr.mxu0 0.0
        %1108 = vmatpush1.xpose.msra.mxu0 0.0
        %1109 = vmatprep.subr.mxu0 0.0
        %1110 = vmatpush1.xpose.msra.mxu0 0.0
        %1111 = vmatprep.subr.mxu0 0.0
        %1112 = vmatpush1.xpose.msra.mxu0 0.0
        %1113 = vmatprep.subr.mxu0 0.0
        %1114 = vmatpush1.xpose.msra.mxu0 0.0
        %1115 = vmatprep.subr.mxu0 0.0
        %1116 = vmatpush1.xpose.msra.mxu0 0.0
        %1117 = vmatprep.mubr.f32.mxu0 0.0
        %1118 = vmatmul.mubr.f32.gmra.mrb[0].mxu0 %v1049
        %v1119 = vpop.f32.mrb[0].mxu0
        %v1120 = vadd.f32 0.0, %v1119
        %v1121 = vpop.f32.mrb[0].mxu0
        %1122 = vdwg.mxu0
        %v1123 = vsel %vm648, %v1120, -inf
        %1124 = vmax.xlane.f32.xlu0 %v1123
        %v1125 = vpop.xlane.xlu0 %1124
        %v1126 = vsub.f32 %v1120, %v1125
        %v1127 = vmul.f32 %v1126, 1.442695
        %v1128 = vpow.pop %v1127
        %v1129 = vsel %vm648, %v1128, 0.0
        %1130 = vadd.xlane.f32.xlu0 %v1129
        %v1131 = vpop.xlane.xlu0 %1130
        %1132 = vrot.lane.b32.xlu0 %v567, 96
        %v1133 = vpop.permute.xlu0 %1132
        %v1136 = vsel %vm648, %v1128, 0
        %1138 = vmatprep.subr.mxu0 0.0
        %1139 = vmatpush1.msra.mxu0 %v1133
        %1140 = vmatprep.subr.mxu0 0.0
        %1141 = vmatpush1.msra.mxu0 0.0
        %1142 = vmatprep.subr.mxu0 0.0
        %1143 = vmatpush1.msra.mxu0 0.0
        %1144 = vmatprep.subr.mxu0 0.0
        %1145 = vmatpush1.msra.mxu0 0.0
        %1146 = vmatprep.subr.mxu0 0.0
        %1147 = vmatpush1.msra.mxu0 0.0
        %1148 = vmatprep.subr.mxu0 0.0
        %1149 = vmatpush1.msra.mxu0 0.0
        %1150 = vmatprep.subr.mxu0 0.0
        %1151 = vmatpush1.msra.mxu0 0.0
        %1152 = vmatprep.subr.mxu0 0.0
        %1153 = vmatpush1.msra.mxu0 0.0
        %1154 = vmatprep.subr.mxu0 0.0
        %1155 = vmatpush1.msra.mxu0 0.0
        %1156 = vmatprep.subr.mxu0 0.0
        %1157 = vmatpush1.msra.mxu0 0.0
        %1158 = vmatprep.subr.mxu0 0.0
        %1159 = vmatpush1.msra.mxu0 0.0
        %1160 = vmatprep.subr.mxu0 0.0
        %1161 = vmatpush1.msra.mxu0 0.0
        %1162 = vmatprep.subr.mxu0 0.0
        %1163 = vmatpush1.msra.mxu0 0.0
        %1164 = vmatprep.subr.mxu0 0.0
        %1165 = vmatpush1.msra.mxu0 0.0
        %1166 = vmatprep.subr.mxu0 0.0
        %1167 = vmatpush1.msra.mxu0 0.0
        %1168 = vmatprep.subr.mxu0 0.0
        %1169 = vmatpush1.msra.mxu0 0.0
        %1170 = vmatprep.subr.mxu0 0.0
        %1171 = vmatpush1.msra.mxu0 0.0
        %1172 = vmatprep.subr.mxu0 0.0
        %1173 = vmatpush1.msra.mxu0 0.0
        %1174 = vmatprep.subr.mxu0 0.0
        %1175 = vmatpush1.msra.mxu0 0.0
        %1176 = vmatprep.subr.mxu0 0.0
        %1177 = vmatpush1.msra.mxu0 0.0
        %1178 = vmatprep.subr.mxu0 0.0
        %1179 = vmatpush1.msra.mxu0 0.0
        %1180 = vmatprep.subr.mxu0 0.0
        %1181 = vmatpush1.msra.mxu0 0.0
        %1182 = vmatprep.subr.mxu0 0.0
        %1183 = vmatpush1.msra.mxu0 0.0
        %1184 = vmatprep.subr.mxu0 0.0
        %1185 = vmatpush1.msra.mxu0 0.0
        %1186 = vmatprep.subr.mxu0 0.0
        %1187 = vmatpush1.msra.mxu0 0.0
        %1188 = vmatprep.subr.mxu0 0.0
        %1189 = vmatpush1.msra.mxu0 0.0
        %1190 = vmatprep.subr.mxu0 0.0
        %1191 = vmatpush1.msra.mxu0 0.0
        %1192 = vmatprep.subr.mxu0 0.0
        %1193 = vmatpush1.msra.mxu0 0.0
        %1194 = vmatprep.subr.mxu0 0.0
        %1195 = vmatpush1.msra.mxu0 0.0
        %1196 = vmatprep.subr.mxu0 0.0
        %1197 = vmatpush1.msra.mxu0 0.0
        %1198 = vmatprep.subr.mxu0 0.0
        %1199 = vmatpush1.msra.mxu0 0.0
        %1200 = vmatprep.subr.mxu0 0.0
        %1201 = vmatpush1.msra.mxu0 0.0
        %1202 = vmatprep.mubr.f32.mxu0 0.0
        %1203 = vmatmul.mubr.f32.gmra.mrb[0].mxu0 %v1136
        %v1204 = vpop.f32.mrb[0].mxu0
        %v1205 = vadd.f32 0.0, %v1204
        %v1206 = vpop.f32.mrb[0].mxu0
        %1207 = vdwg.mxu0
        %v1208 = vrcp.pop %v1131
        %v1209 = vmul.f32 %v1205, %v1208
        %v1211 = vsel %vm571, %v1209, 0
        %1213 = vmatprep.subr.mxu0 0.0
        %1214 = vmatpush1.msra.mxu0 %v349
        %1215 = vmatprep.subr.mxu0 0.0
        %1216 = vmatpush1.msra.mxu0 %v350
        %1217 = vmatprep.subr.mxu0 0.0
        %1218 = vmatpush1.msra.mxu0 0.0
        %1219 = vmatprep.subr.mxu0 0.0
        %1220 = vmatpush1.msra.mxu0 0.0
        %1221 = vmatprep.subr.mxu0 0.0
        %1222 = vmatpush1.msra.mxu0 0.0
        %1223 = vmatprep.subr.mxu0 0.0
        %1224 = vmatpush1.msra.mxu0 0.0
        %1225 = vmatprep.subr.mxu0 0.0
        %1226 = vmatpush1.msra.mxu0 0.0
        %1227 = vmatprep.subr.mxu0 0.0
        %1228 = vmatpush1.msra.mxu0 0.0
        %1229 = vmatprep.subr.mxu0 0.0
        %1230 = vmatpush1.msra.mxu0 0.0
        %1231 = vmatprep.subr.mxu0 0.0
        %1232 = vmatpush1.msra.mxu0 0.0
        %1233 = vmatprep.subr.mxu0 0.0
        %1234 = vmatpush1.msra.mxu0 0.0
        %1235 = vmatprep.subr.mxu0 0.0
        %1236 = vmatpush1.msra.mxu0 0.0
        %1237 = vmatprep.subr.mxu0 0.0
        %1238 = vmatpush1.msra.mxu0 0.0
        %1239 = vmatprep.subr.mxu0 0.0
        %1240 = vmatpush1.msra.mxu0 0.0
        %1241 = vmatprep.subr.mxu0 0.0
        %1242 = vmatpush1.msra.mxu0 0.0
        %1243 = vmatprep.subr.mxu0 0.0
        %1244 = vmatpush1.msra.mxu0 0.0
        %1245 = vmatprep.subr.mxu0 0.0
        %1246 = vmatpush1.msra.mxu0 0.0
        %1247 = vmatprep.subr.mxu0 0.0
        %1248 = vmatpush1.msra.mxu0 0.0
        %1249 = vmatprep.subr.mxu0 0.0
        %1250 = vmatpush1.msra.mxu0 0.0
        %1251 = vmatprep.subr.mxu0 0.0
        %1252 = vmatpush1.msra.mxu0 0.0
        %1253 = vmatprep.subr.mxu0 0.0
        %1254 = vmatpush1.msra.mxu0 0.0
        %1255 = vmatprep.subr.mxu0 0.0
        %1256 = vmatpush1.msra.mxu0 0.0
        %1257 = vmatprep.subr.mxu0 0.0
        %1258 = vmatpush1.msra.mxu0 0.0
        %1259 = vmatprep.subr.mxu0 0.0
        %1260 = vmatpush1.msra.mxu0 0.0
        %1261 = vmatprep.subr.mxu0 0.0
        %1262 = vmatpush1.msra.mxu0 0.0
        %1263 = vmatprep.subr.mxu0 0.0
        %1264 = vmatpush1.msra.mxu0 0.0
        %1265 = vmatprep.subr.mxu0 0.0
        %1266 = vmatpush1.msra.mxu0 0.0
        %1267 = vmatprep.subr.mxu0 0.0
        %1268 = vmatpush1.msra.mxu0 0.0
        %1269 = vmatprep.subr.mxu0 0.0
        %1270 = vmatpush1.msra.mxu0 0.0
        %1271 = vmatprep.subr.mxu0 0.0
        %1272 = vmatpush1.msra.mxu0 0.0
        %1273 = vmatprep.subr.mxu0 0.0
        %1274 = vmatpush1.msra.mxu0 0.0
        %1275 = vmatprep.subr.mxu0 0.0
        %1276 = vmatpush1.msra.mxu0 0.0
        %1277 = vmatprep.mubr.f32.mxu0 0.0
        %1278 = vmatmul.mubr.f32.gmra.mrb[0].mxu0 %v1211
        %v1279 = vpop.f32.mrb[0].mxu0
        %v1280 = vadd.f32 0.0, %v1279
        %v1281 = vpop.f32.mrb[0].mxu0
        %1282 = vdwg.mxu0
        %v1283 = vadd.f32 %v1042, %v1280
        %1284 = vrot.lane.b32.xlu0 %v570, 80
        %v1285 = vpop.permute.xlu0 %1284
        %1286 = vrot.lane.b32.xlu0 %v497, 80
        %v1287 = vpop.permute.xlu0 %1286
        %v1288 = vsel %vm571, %v1285, 0
        %v1290 = vsel %vm571, %v1287, 0
        %1292 = vmatprep.subr.mxu0 0.0
        %1293 = vmatpush1.xpose.msra.mxu0 %v1290
        %1294 = vmatprep.subr.mxu0 0.0
        %1295 = vmatpush1.xpose.msra.mxu0 0.0
        %1296 = vmatprep.subr.mxu0 0.0
        %1297 = vmatpush1.xpose.msra.mxu0 0.0
        %1298 = vmatprep.subr.mxu0 0.0
        %1299 = vmatpush1.xpose.msra.mxu0 0.0
        %1300 = vmatprep.subr.mxu0 0.0
        %1301 = vmatpush1.xpose.msra.mxu0 0.0
        %1302 = vmatprep.subr.mxu0 0.0
        %1303 = vmatpush1.xpose.msra.mxu0 0.0
        %1304 = vmatprep.subr.mxu0 0.0
        %1305 = vmatpush1.xpose.msra.mxu0 0.0
        %1306 = vmatprep.subr.mxu0 0.0
        %1307 = vmatpush1.xpose.msra.mxu0 0.0
        %1308 = vmatprep.subr.mxu0 0.0
        %1309 = vmatpush1.xpose.msra.mxu0 0.0
        %1310 = vmatprep.subr.mxu0 0.0
        %1311 = vmatpush1.xpose.msra.mxu0 0.0
        %1312 = vmatprep.subr.mxu0 0.0
        %1313 = vmatpush1.xpose.msra.mxu0 0.0
        %1314 = vmatprep.subr.mxu0 0.0
        %1315 = vmatpush1.xpose.msra.mxu0 0.0
        %1316 = vmatprep.subr.mxu0 0.0
        %1317 = vmatpush1.xpose.msra.mxu0 0.0
        %1318 = vmatprep.subr.mxu0 0.0
        %1319 = vmatpush1.xpose.msra.mxu0 0.0
        %1320 = vmatprep.subr.mxu0 0.0
        %1321 = vmatpush1.xpose.msra.mxu0 0.0
        %1322 = vmatprep.subr.mxu0 0.0
        %1323 = vmatpush1.xpose.msra.mxu0 0.0
        %1324 = vmatprep.subr.mxu0 0.0
        %1325 = vmatpush1.xpose.msra.mxu0 0.0
        %1326 = vmatprep.subr.mxu0 0.0
        %1327 = vmatpush1.xpose.msra.mxu0 0.0
        %1328 = vmatprep.subr.mxu0 0.0
        %1329 = vmatpush1.xpose.msra.mxu0 0.0
        %1330 = vmatprep.subr.mxu0 0.0
        %1331 = vmatpush1.xpose.msra.mxu0 0.0
        %1332 = vmatprep.subr.mxu0 0.0
        %1333 = vmatpush1.xpose.msra.mxu0 0.0
        %1334 = vmatprep.subr.mxu0 0.0
        %1335 = vmatpush1.xpose.msra.mxu0 0.0
        %1336 = vmatprep.subr.mxu0 0.0
        %1337 = vmatpush1.xpose.msra.mxu0 0.0
        %1338 = vmatprep.subr.mxu0 0.0
        %1339 = vmatpush1.xpose.msra.mxu0 0.0
        %1340 = vmatprep.subr.mxu0 0.0
        %1341 = vmatpush1.xpose.msra.mxu0 0.0
        %1342 = vmatprep.subr.mxu0 0.0
        %1343 = vmatpush1.xpose.msra.mxu0 0.0
        %1344 = vmatprep.subr.mxu0 0.0
        %1345 = vmatpush1.xpose.msra.mxu0 0.0
        %1346 = vmatprep.subr.mxu0 0.0
        %1347 = vmatpush1.xpose.msra.mxu0 0.0
        %1348 = vmatprep.subr.mxu0 0.0
        %1349 = vmatpush1.xpose.msra.mxu0 0.0
        %1350 = vmatprep.subr.mxu0 0.0
        %1351 = vmatpush1.xpose.msra.mxu0 0.0
        %1352 = vmatprep.subr.mxu0 0.0
        %1353 = vmatpush1.xpose.msra.mxu0 0.0
        %1354 = vmatprep.subr.mxu0 0.0
        %1355 = vmatpush1.xpose.msra.mxu0 0.0
        %1356 = vmatprep.mubr.f32.mxu0 0.0
        %1357 = vmatmul.mubr.f32.gmra.mrb[0].mxu0 %v1288
        %v1358 = vpop.f32.mrb[0].mxu0
        %v1359 = vadd.f32 0.0, %v1358
        %v1360 = vpop.f32.mrb[0].mxu0
        %1361 = vdwg.mxu0
        %v1362 = vsel %vm648, %v1359, -inf
        %1363 = vmax.xlane.f32.xlu0 %v1362
        %v1364 = vpop.xlane.xlu0 %1363
        %v1365 = vsub.f32 %v1359, %v1364
        %v1366 = vmul.f32 %v1365, 1.442695
        %v1367 = vpow.pop %v1366
        %v1368 = vsel %vm648, %v1367, 0.0
        %1369 = vadd.xlane.f32.xlu0 %v1368
        %v1370 = vpop.xlane.xlu0 %1369
        %1371 = vrot.lane.b32.xlu0 %v567, 80
        %v1372 = vpop.permute.xlu0 %1371
        %v1375 = vsel %vm648, %v1367, 0
        %1377 = vmatprep.subr.mxu0 0.0
        %1378 = vmatpush1.msra.mxu0 %v1372
        %1379 = vmatprep.subr.mxu0 0.0
        %1380 = vmatpush1.msra.mxu0 0.0
        %1381 = vmatprep.subr.mxu0 0.0
        %1382 = vmatpush1.msra.mxu0 0.0
        %1383 = vmatprep.subr.mxu0 0.0
        %1384 = vmatpush1.msra.mxu0 0.0
        %1385 = vmatprep.subr.mxu0 0.0
        %1386 = vmatpush1.msra.mxu0 0.0
        %1387 = vmatprep.subr.mxu0 0.0
        %1388 = vmatpush1.msra.mxu0 0.0
        %1389 = vmatprep.subr.mxu0 0.0
        %1390 = vmatpush1.msra.mxu0 0.0
        %1391 = vmatprep.subr.mxu0 0.0
        %1392 = vmatpush1.msra.mxu0 0.0
        %1393 = vmatprep.subr.mxu0 0.0
        %1394 = vmatpush1.msra.mxu0 0.0
        %1395 = vmatprep.subr.mxu0 0.0
        %1396 = vmatpush1.msra.mxu0 0.0
        %1397 = vmatprep.subr.mxu0 0.0
        %1398 = vmatpush1.msra.mxu0 0.0
        %1399 = vmatprep.subr.mxu0 0.0
        %1400 = vmatpush1.msra.mxu0 0.0
        %1401 = vmatprep.subr.mxu0 0.0
        %1402 = vmatpush1.msra.mxu0 0.0
        %1403 = vmatprep.subr.mxu0 0.0
        %1404 = vmatpush1.msra.mxu0 0.0
        %1405 = vmatprep.subr.mxu0 0.0
        %1406 = vmatpush1.msra.mxu0 0.0
        %1407 = vmatprep.subr.mxu0 0.0
        %1408 = vmatpush1.msra.mxu0 0.0
        %1409 = vmatprep.subr.mxu0 0.0
        %1410 = vmatpush1.msra.mxu0 0.0
        %1411 = vmatprep.subr.mxu0 0.0
        %1412 = vmatpush1.msra.mxu0 0.0
        %1413 = vmatprep.subr.mxu0 0.0
        %1414 = vmatpush1.msra.mxu0 0.0
        %1415 = vmatprep.subr.mxu0 0.0
        %1416 = vmatpush1.msra.mxu0 0.0
        %1417 = vmatprep.subr.mxu0 0.0
        %1418 = vmatpush1.msra.mxu0 0.0
        %1419 = vmatprep.subr.mxu0 0.0
        %1420 = vmatpush1.msra.mxu0 0.0
        %1421 = vmatprep.subr.mxu0 0.0
        %1422 = vmatpush1.msra.mxu0 0.0
        %1423 = vmatprep.subr.mxu0 0.0
        %1424 = vmatpush1.msra.mxu0 0.0
        %1425 = vmatprep.subr.mxu0 0.0
        %1426 = vmatpush1.msra.mxu0 0.0
        %1427 = vmatprep.subr.mxu0 0.0
        %1428 = vmatpush1.msra.mxu0 0.0
        %1429 = vmatprep.subr.mxu0 0.0
        %1430 = vmatpush1.msra.mxu0 0.0
        %1431 = vmatprep.subr.mxu0 0.0
        %1432 = vmatpush1.msra.mxu0 0.0
        %1433 = vmatprep.subr.mxu0 0.0
        %1434 = vmatpush1.msra.mxu0 0.0
        %1435 = vmatprep.subr.mxu0 0.0
        %1436 = vmatpush1.msra.mxu0 0.0
        %1437 = vmatprep.subr.mxu0 0.0
        %1438 = vmatpush1.msra.mxu0 0.0
        %1439 = vmatprep.subr.mxu0 0.0
        %1440 = vmatpush1.msra.mxu0 0.0
        %1441 = vmatprep.mubr.f32.mxu0 0.0
        %1442 = vmatmul.mubr.f32.gmra.mrb[0].mxu0 %v1375
        %v1443 = vpop.f32.mrb[0].mxu0
        %v1444 = vadd.f32 0.0, %v1443
        %v1445 = vpop.f32.mrb[0].mxu0
        %1446 = vdwg.mxu0
        %v1447 = vrcp.pop %v1370
        %v1448 = vmul.f32 %v1444, %v1447
        %v1450 = vsel %vm571, %v1448, 0
        %1452 = vmatprep.subr.mxu0 0.0
        %1453 = vmatpush1.msra.mxu0 %v351
        %1454 = vmatprep.subr.mxu0 0.0
        %1455 = vmatpush1.msra.mxu0 %v352
        %1456 = vmatprep.subr.mxu0 0.0
        %1457 = vmatpush1.msra.mxu0 0.0
        %1458 = vmatprep.subr.mxu0 0.0
        %1459 = vmatpush1.msra.mxu0 0.0
        %1460 = vmatprep.subr.mxu0 0.0
        %1461 = vmatpush1.msra.mxu0 0.0
        %1462 = vmatprep.subr.mxu0 0.0
        %1463 = vmatpush1.msra.mxu0 0.0
        %1464 = vmatprep.subr.mxu0 0.0
        %1465 = vmatpush1.msra.mxu0 0.0
        %1466 = vmatprep.subr.mxu0 0.0
        %1467 = vmatpush1.msra.mxu0 0.0
        %1468 = vmatprep.subr.mxu0 0.0
        %1469 = vmatpush1.msra.mxu0 0.0
        %1470 = vmatprep.subr.mxu0 0.0
        %1471 = vmatpush1.msra.mxu0 0.0
        %1472 = vmatprep.subr.mxu0 0.0
        %1473 = vmatpush1.msra.mxu0 0.0
        %1474 = vmatprep.subr.mxu0 0.0
        %1475 = vmatpush1.msra.mxu0 0.0
        %1476 = vmatprep.subr.mxu0 0.0
        %1477 = vmatpush1.msra.mxu0 0.0
        %1478 = vmatprep.subr.mxu0 0.0
        %1479 = vmatpush1.msra.mxu0 0.0
        %1480 = vmatprep.subr.mxu0 0.0
        %1481 = vmatpush1.msra.mxu0 0.0
        %1482 = vmatprep.subr.mxu0 0.0
        %1483 = vmatpush1.msra.mxu0 0.0
        %1484 = vmatprep.subr.mxu0 0.0
        %1485 = vmatpush1.msra.mxu0 0.0
        %1486 = vmatprep.subr.mxu0 0.0
        %1487 = vmatpush1.msra.mxu0 0.0
        %1488 = vmatprep.subr.mxu0 0.0
        %1489 = vmatpush1.msra.mxu0 0.0
        %1490 = vmatprep.subr.mxu0 0.0
        %1491 = vmatpush1.msra.mxu0 0.0
        %1492 = vmatprep.subr.mxu0 0.0
        %1493 = vmatpush1.msra.mxu0 0.0
        %1494 = vmatprep.subr.mxu0 0.0
        %1495 = vmatpush1.msra.mxu0 0.0
        %1496 = vmatprep.subr.mxu0 0.0
        %1497 = vmatpush1.msra.mxu0 0.0
        %1498 = vmatprep.subr.mxu0 0.0
        %1499 = vmatpush1.msra.mxu0 0.0
        %1500 = vmatprep.subr.mxu0 0.0
        %1501 = vmatpush1.msra.mxu0 0.0
        %1502 = vmatprep.subr.mxu0 0.0
        %1503 = vmatpush1.msra.mxu0 0.0
        %1504 = vmatprep.subr.mxu0 0.0
        %1505 = vmatpush1.msra.mxu0 0.0
        %1506 = vmatprep.subr.mxu0 0.0
        %1507 = vmatpush1.msra.mxu0 0.0
        %1508 = vmatprep.subr.mxu0 0.0
        %1509 = vmatpush1.msra.mxu0 0.0
        %1510 = vmatprep.subr.mxu0 0.0
        %1511 = vmatpush1.msra.mxu0 0.0
        %1512 = vmatprep.subr.mxu0 0.0
        %1513 = vmatpush1.msra.mxu0 0.0
        %1514 = vmatprep.subr.mxu0 0.0
        %1515 = vmatpush1.msra.mxu0 0.0
        %1516 = vmatprep.mubr.f32.mxu0 0.0
        %1517 = vmatmul.mubr.f32.gmra.mrb[0].mxu0 %v1450
        %v1518 = vpop.f32.mrb[0].mxu0
        %v1519 = vadd.f32 0.0, %v1518
        %v1520 = vpop.f32.mrb[0].mxu0
        %1521 = vdwg.mxu0
        %v1522 = vadd.f32 %v1283, %v1519
        %v1523 = vld [vmem:[%s6] sm:$0x1]
        %v1525 = vlaneseq
        %v1526 = vshrl.u32 %v1525, 7
        %v1527 = vsub.s32 0, %v1526
        %v1528 = vrot.slane %v1523, %v1527
        %v1530 = vadd.f32 %v1522, %v1528
        %1531 = vst.msk [vmem:[%s330] sm:$0xff] %vm353, %v1530
        %s1532 = sand.u32 %s192, 1
        %s1533 = scalar_lea.sflag [#allocation4], %s1532
        %s1534 = sand.u32 %s192, 1
        %s1535 = smul.addr %s1534, 8
        %s1536 = scalar_lea.vmem [#allocation7], %s1535
        // Predicated region
        $region57: #{tpu_custom_call.1} parent=47 // pred_check
          %p1537 = pneg %p202
        $region58: #{tpu_custom_call.1} parent=47 // pred_check_branch
          %1539 = sbr.rel (%p1537) target = $region60
        $region59: #{tpu_custom_call.1} parent=47 // pred_region
          %s1541 = ssub.s32 128, 128
          %1542 = vsyncadd %s1533, %s1541
          %s1543 = smul.addr %s27, 128
          %s1544 = scalar_lea.hbm %s7, %s1543
          %s1546 = sshll.u32 %s1536, 4
          %s1547 = int_to_ptr.vmem [resolvable:$true] %s1546
          %1549 = dma.vmem_to_hbm [thread:$0]  %s1547, 128, %s1544, %s1533
        $region60: #{tpu_custom_call.1} parent=47 // pred_fallthru
          _
      $region48: #{tpu_custom_call.1} parent=5 // pred_fallthru
        _
      %p1550 = scmp.le.s32.totalorder 2, %s22
      // Predicated region
      $region61: #{tpu_custom_call.1} parent=5 // pred_check
        %p1551 = pneg %p1550
      $region62: #{tpu_custom_call.1} parent=5 // pred_check_branch
        %1553 = sbr.rel (%p1551) target = $region64
      $region63: #{tpu_custom_call.1} parent=5 // pred_region
        %s1554 = ssub.s32 %s22, 2
        // Predicated region
        $region65: #{tpu_custom_call.1} parent=63 // pred_check
          %p1555 = pneg %p208
        $region66: #{tpu_custom_call.1} parent=63 // pred_check_branch
          %1557 = sbr.rel (%p1555) target = $region68
        $region67: #{tpu_custom_call.1} parent=63 // pred_region
          %s1558 = sand.u32 %s193, 1
          %s1559 = scalar_lea.sflag [#allocation4], %s1558
          %s1560 = sand.u32 %s193, 1
          %s1561 = smul.addr %s1560, 8
          %s1562 = scalar_lea.vmem [#allocation7], %s1561
          %1563 = dma.done %s1559, 128
        $region68: #{tpu_custom_call.1} parent=63 // pred_fallthru
          _
      $region64: #{tpu_custom_call.1} parent=5 // pred_fallthru
        _
    $region6: #{tpu_custom_call.1} parent=1 // loop_footer
      %s26 = sadd.s32 1, %s22
    $region7: #{tpu_custom_call.1} parent=1 // loop_footer_branch
      %21 = sbr.rel target = $region3
    $region8: #{tpu_custom_call.1} parent=1 // loop_exit
      _
    %1564 = vsyncpa [#allocation3], 1
    %s1565 = scalar_lea.sflag [#allocation3], 1
    %1566 = vsyncpa %s1565, 1
    %1567 = vsyncpa [#allocation6], 1
    %s1568 = scalar_lea.sflag [#allocation6], 1
    %1569 = vsyncpa %s1568, 1
    %1570 = vsyncpa [#allocation4], 1
    %s1571 = scalar_lea.sflag [#allocation4], 1
    %1572 = vsyncpa %s1571, 1

</llo_original>
